<compile_context>
chip_gen: v7x
topology: tpu7x:2x2x1
jax: 0.10.0
libtpu: 0.0.40
codegen_flags: <defaults>
</compile_context>

<pallas_src>
import math

import jax
import jax.numpy as jnp
from jax import lax
from jax.experimental import pallas as pl
from jax.experimental.pallas import tpu as pltpu

# ---- small synthetic config ----
HIDDEN = 32              # config.hidden_size
MLP_DIM = 2 * HIDDEN     # 64
H2 = MLP_DIM // 2        # 32  (LSTM hidden per direction == linear-1 width)
D4 = MLP_DIM // 4        # 16  (biaffine feature dim)
SEQ = 16                 # token sequence length
NREL = 8                 # number of relations (LSTM "time" axis, batch=1)
NENT = 6                 # number of entities
NLABEL = 5               # entity_emb vocab size
OUT_PAD = 128            # lane-dense output width (first 2 columns are the real logits)


def cell_decoder_kernel(
    hs_ref, maskp_ref, labp_ref,
    wih_ref, whh_ref, bf_ref, bb_ref,
    w1_ref, b1_ref, w2_ref, b2_ref,
    bw_ref, wlin_ref, blin_ref,
    out_ref,
    ht_buf,
):
    f32 = jnp.float32
    hs = hs_ref[...]                                        # (S, H)

    # ---- entity mean-pooling for all packed rows (mask already scaled by 1/len) ----
    # packed row order: row 4t+0 = head@t (fwd), 4t+1 = tail@t (fwd),
    #                   row 4t+2 = head@(T-1-t) (bwd), 4t+3 = tail@(T-1-t) (bwd)
    pooled = jnp.dot(maskp_ref[...], hs, preferred_element_type=f32)        # (4R, H)

    # ---- hoisted input->gate projection for every step & both directions ----
    wih = wih_ref[...]                                      # (MLP_DIM, 8*H2) = [fwd | bwd], gates i,f,o,g
    gx = (jnp.dot(pooled, wih[0:HIDDEN, :], preferred_element_type=f32)
          + jnp.dot(labp_ref[...], wih[HIDDEN:MLP_DIM, :], preferred_element_type=f32))  # (4R, 8*H2)

    row = lax.broadcasted_iota(jnp.int32, (4 * NREL, 1), 0)
    is_bwd = (row % 4) >= 2
    # pick the direction half and fold the (pre-summed) bias in, once, outside the loop
    gx_sel = jnp.where(is_bwd,
                       gx[:, 4 * H2:8 * H2] + bb_ref[...],
                       gx[:, 0:4 * H2] + bf_ref[...])                        # (4R, 4*H2)

    whh = whh_ref[...]                                      # (H2, 8*H2) = [fwd | bwd]
    row4 = lax.broadcasted_iota(jnp.int32, (4, 1), 0)
    is_bwd4 = row4 >= 2

    # ---- fused, fully-unrolled bidirectional LSTM recurrence ----
    h = jnp.zeros((4, H2), f32)
    c = jnp.zeros((4, H2), f32)
    for t in range(NREL):
        hh = jnp.dot(h, whh, preferred_element_type=f32)                     # (4, 8*H2)
        gates = gx_sel[4 * t:4 * t + 4, :] + jnp.where(
            is_bwd4, hh[:, 4 * H2:8 * H2], hh[:, 0:4 * H2])                  # (4, 4*H2), order i,f,o,g
        # one EUP op covers sigmoid(i|f|o) via tanh form; one more for g; one for tanh(c)
        sig = 0.5 * jnp.tanh(0.5 * gates[:, 0:3 * H2]) + 0.5                 # (4, 3*H2)
        i_g = sig[:, 0:H2]
        f_g = sig[:, H2:2 * H2]
        o_g = sig[:, 2 * H2:3 * H2]
        g_g = jnp.tanh(gates[:, 3 * H2:4 * H2])
        c = f_g * c + i_g * g_g
        h = o_g * jnp.tanh(c)

        # scatter this step's hidden states (static offsets, off the h/c critical chain)
        # ht_buf row u = [head_fwd(u) | head_bwd(u) | tail_fwd(u) | tail_bwd(u)]
        tp = NREL - 1 - t
        ht_buf[t:t + 1, 0:H2] = h[0:1, :]                    # head fwd @ t
        ht_buf[tp:tp + 1, H2:2 * H2] = h[2:3, :]             # head bwd @ T-1-t
        ht_buf[t:t + 1, 2 * H2:3 * H2] = h[1:2, :]           # tail fwd @ t
        ht_buf[tp:tp + 1, 3 * H2:4 * H2] = h[3:4, :]         # tail bwd @ T-1-t

    ht = ht_buf[...]                                         # (R, 4*H2) = [lstm_head | lstm_tail]

    # ---- ffnn_head + ffnn_tail batched with block-diagonal weights (Dropout == identity) ----
    z1 = jnp.maximum(jnp.dot(ht, w1_ref[...], preferred_element_type=f32) + b1_ref[...], 0.0)   # (R, 2*H2)
    z2 = jnp.maximum(jnp.dot(z1, w2_ref[...], preferred_element_type=f32) + b2_ref[...], 0.0)   # (R, 2*D4) = [heads|tails]

    # ---- BiaffineAttention: bilinear(2 slices) + linear(concat) ----
    tails = z2[:, D4:2 * D4]                                                 # (R, D4)
    hb = jnp.dot(z2, bw_ref[...], preferred_element_type=f32)                # (R, 2*D4) = [heads@bw0 | heads@bw1]
    b1 = jnp.sum(hb[:, 0:D4] * tails, axis=-1, keepdims=True)                # (R, 1)
    b2 = jnp.sum(hb[:, D4:2 * D4] * tails, axis=-1, keepdims=True)           # (R, 1)
    lin = jnp.dot(z2, wlin_ref[...], preferred_element_type=f32) + blin_ref[...]   # (R, OUT_PAD), cols>=2 zero

    col = lax.broadcasted_iota(jnp.int32, (NREL, OUT_PAD), 1)
    out_ref[...] = lin + jnp.where(col == 0, b1, 0.0) + jnp.where(col == 1, b2, 0.0)


def _reorder_gates(w):
    """PyTorch gate order (i, f, g, o) -> kernel order (i, f, o, g) along the last axis."""
    return jnp.concatenate(
        [w[..., 0:H2], w[..., H2:2 * H2], w[..., 3 * H2:4 * H2], w[..., 2 * H2:3 * H2]], axis=-1)


def cell_decoder_forward(params, hidden_states, labels, head_id, tail_id,
                         relations_head_mask, relations_head_len,
                         relations_tail_mask, relations_tail_len):
    f32 = jnp.float32
    # ---- glue (plain JAX): indexing + embedding gather + weight repacking ----
    hs0 = hidden_states[0].astype(f32)                              # (S, H)
    hlab = params["entity_emb"][labels[head_id]].astype(f32)        # (R, H)
    tlab = params["entity_emb"][labels[tail_id]].astype(f32)        # (R, H)

    # mean pooling folded into the mask (caller guarantees non-empty spans; zero-length -> inf)
    hm = relations_head_mask.astype(f32) / relations_head_len.astype(f32)   # (R, S)
    tm = relations_tail_mask.astype(f32) / relations_tail_len.astype(f32)

    # packed per-step row order: [head_fwd(t), tail_fwd(t), head_bwd(T-1-t), tail_bwd(T-1-t)]
    mask_packed = jnp.stack([hm, tm, hm[::-1], tm[::-1]], axis=1).reshape(4 * NREL, SEQ)
    lab_packed = jnp.stack([hlab, tlab, hlab[::-1], tlab[::-1]], axis=1).reshape(4 * NREL, HIDDEN)

    # LSTM weights: concat fwd|bwd along the output axis, gates reordered to i,f,o,g
    wih_cat = jnp.concatenate([_reorder_gates(params["wf_ih"]),
                               _reorder_gates(params["wb_ih"])], axis=1)     # (64, 256)
    whh_cat = jnp.concatenate([_reorder_gates(params["wf_hh"]),
                               _reorder_gates(params["wb_hh"])], axis=1)     # (32, 256)
    bf_k = _reorder_gates(params["bf"])                                      # (1, 128)
    bb_k = _reorder_gates(params["bb"])                                      # (1, 128)

    # block-diagonal FFNN weights so head/tail run through one matmul per layer
    zH = jnp.zeros((MLP_DIM, H2), f32)
    w1_blk = jnp.concatenate(
        [jnp.concatenate([params["wh1"], zH], axis=1),
         jnp.concatenate([zH, params["wt1"]], axis=1)], axis=0)              # (128, 64)
    b1_blk = jnp.concatenate([params["bh1"], params["bt1"]], axis=1)         # (1, 64)
    zD = jnp.zeros((H2, D4), f32)
    w2_blk = jnp.concatenate(
        [jnp.concatenate([params["wh2"], zD], axis=1),
         jnp.concatenate([zD, params["wt2"]], axis=1)], axis=0)              # (64, 32)
    b2_blk = jnp.concatenate([params["bh2"], params["bt2"]], axis=1)         # (1, 32)

    # fused bilinear weight: [heads|tails] @ [[bw0 bw1],[0 0]] = [heads@bw0 | heads@bw1]
    bw_pad = jnp.concatenate(
        [jnp.concatenate([params["bw0"], params["bw1"]], axis=1),
         jnp.zeros((D4, 2 * D4), f32)], axis=0)                              # (32, 32)

    # lane-dense output: pad the linear head to 128 columns, slice [:, :2] afterwards
    wlin_pad = jnp.concatenate([params["wlin"], jnp.zeros((2 * D4, OUT_PAD - 2), f32)], axis=1)
    blin_pad = jnp.concatenate([params["blin"], jnp.zeros((1, OUT_PAD - 2), f32)], axis=1)

    args = (hs0, mask_packed, lab_packed,
            wih_cat, whh_cat, bf_k, bb_k,
            w1_blk, b1_blk, w2_blk, b2_blk,
            bw_pad, wlin_pad, blin_pad)

    out = pl.pallas_call(
        cell_decoder_kernel,
        out_shape=jax.ShapeDtypeStruct((NREL, OUT_PAD), f32),
        in_specs=[pl.BlockSpec(memory_space=pltpu.MemorySpace.VMEM)] * len(args),
        out_specs=pl.BlockSpec(memory_space=pltpu.MemorySpace.VMEM),
        scratch_shapes=[
            pltpu.VMEM((NREL, 4 * H2), jnp.float32),   # FFNN-ready LSTM outputs [head_f|head_b|tail_f|tail_b]
        ],
    )(*args)
    return out[:, :2]


# ------------------ pure-JAX reference for a correctness check ------------------
def reference_forward(params, hidden_states, labels, head_id, tail_id,
                      hmask, hlen, tmask, tlen):
    hs0 = hidden_states[0]
    hlab = params["entity_emb"][labels[head_id]]
    tlab = params["entity_emb"][labels[tail_id]]
    head_repr = jnp.concatenate([(hmask @ hs0) / hlen, hlab], axis=-1)
    tail_repr = jnp.concatenate([(tmask @ hs0) / tlen, tlab], axis=-1)

    def lstm_dir(x, w_ih, w_hh, b, reverse):
        if reverse:
            x = x[::-1]

        def step(carry, x_t):
            h, c = carry
            gates = x_t @ w_ih + h @ w_hh + b[0]
            i = 1.0 / (1.0 + jnp.exp(-gates[0 * H2:1 * H2]))
            f = 1.0 / (1.0 + jnp.exp(-gates[1 * H2:2 * H2]))
            g = jnp.tanh(gates[2 * H2:3 * H2])
            o = 1.0 / (1.0 + jnp.exp(-gates[3 * H2:4 * H2]))
            c = f * c + i * g
            h = o * jnp.tanh(c)
            return (h, c), h

        h0 = jnp.zeros((H2,), jnp.float32)
        _, hs_all = lax.scan(step, (h0, h0), x)
        if reverse:
            hs_all = hs_all[::-1]
        return hs_all

    def bilstm(x):
        fwd = lstm_dir(x, params["wf_ih"], params["wf_hh"], params["bf"], False)
        bwd = lstm_dir(x, params["wb_ih"], params["wb_hh"], params["bb"], True)
        return jnp.concatenate([fwd, bwd], axis=-1)

    lh, lt = bilstm(head_repr), bilstm(tail_repr)
    heads = jnp.maximum(lh @ params["wh1"] + params["bh1"], 0.0)
    heads = jnp.maximum(heads @ params["wh2"] + params["bh2"], 0.0)
    tails = jnp.maximum(lt @ params["wt1"] + params["bt1"], 0.0)
    tails = jnp.maximum(tails @ params["wt2"] + params["bt2"], 0.0)
    b1 = jnp.sum((heads @ params["bw0"]) * tails, axis=-1, keepdims=True)
    b2 = jnp.sum((heads @ params["bw1"]) * tails, axis=-1, keepdims=True)
    lin = jnp.concatenate([heads, tails], axis=-1) @ params["wlin"] + params["blin"]
    return jnp.concatenate([b1, b2], axis=-1) + lin


def init_params(key):
    ks = jax.random.split(key, 24)

    def u(k, shape, fan_in):
        bound = 1.0 / math.sqrt(fan_in)
        return jax.random.uniform(k, shape, jnp.float32, -bound, bound)

    return {
        # nn.Embedding(5, hidden_size)
        "entity_emb": jax.random.normal(ks[0], (NLABEL, HIDDEN), jnp.float32),
        # nn.LSTM(MLP_DIM, H2, bidirectional=True); biases (ih+hh) pre-summed, gate order i,f,g,o
        "wf_ih": u(ks[1], (MLP_DIM, 4 * H2), H2), "wf_hh": u(ks[2], (H2, 4 * H2), H2),
        "bf": u(ks[3], (1, 4 * H2), H2),
        "wb_ih": u(ks[4], (MLP_DIM, 4 * H2), H2), "wb_hh": u(ks[5], (H2, 4 * H2), H2),
        "bb": u(ks[6], (1, 4 * H2), H2),
        # ffnn_head: Linear(64,32) -> ReLU -> Linear(32,16) -> ReLU
        "wh1": u(ks[7], (MLP_DIM, H2), MLP_DIM), "bh1": u(ks[8], (1, H2), MLP_DIM),
        "wh2": u(ks[9], (H2, D4), H2), "bh2": u(ks[10], (1, D4), H2),
        # ffnn_tail
        "wt1": u(ks[11], (MLP_DIM, H2), MLP_DIM), "bt1": u(ks[12], (1, H2), MLP_DIM),
        "wt2": u(ks[13], (H2, D4), H2), "bt2": u(ks[14], (1, D4), H2),
        # MyBilinear weight (2, D4, D4) and Linear(2*D4, 2)
        "bw0": u(ks[15], (D4, D4), D4), "bw1": u(ks[16], (D4, D4), D4),
        "wlin": u(ks[17], (2 * D4, 2), 2 * D4), "blin": u(ks[18], (1, 2), 2 * D4),
    }


if __name__ == "__main__":
    key = jax.random.PRNGKey(0)
    k_params, k_hs, k_lab, k_head, k_tail, k_hm, k_tm = jax.random.split(key, 7)

    params = init_params(k_params)

    hidden_states = jax.random.normal(k_hs, (1, SEQ, HIDDEN), jnp.float32)
    labels = jax.random.randint(k_lab, (NENT,), 0, NLABEL)
    head_id = jax.random.randint(k_head, (NREL,), 0, NENT)
    tail_id = jax.random.randint(k_tail, (NREL,), 0, NENT)

    hmask = (jax.random.uniform(k_hm, (NREL, SEQ)) > 0.5).astype(jnp.float32)
    tmask = (jax.random.uniform(k_tm, (NREL, SEQ)) > 0.5).astype(jnp.float32)
    hmask = hmask.at[:, 0].set(1.0)   # guarantee non-empty spans
    tmask = tmask.at[:, 0].set(1.0)
    hlen = jnp.sum(hmask, axis=-1, keepdims=True)
    tlen = jnp.sum(tmask, axis=-1, keepdims=True)

    logits = cell_decoder_forward(params, hidden_states, labels, head_id, tail_id,
                                  hmask, hlen, tmask, tlen)
    logits = jax.block_until_ready(logits)

    ref = reference_forward(params, hidden_states, labels, head_id, tail_id,
                            hmask, hlen, tmask, tlen)

    assert logits.shape == (NREL, 2), logits.shape
    assert bool(jnp.allclose(logits, ref, atol=5e-2, rtol=5e-2)), (logits, ref)
    print("KERNEL_OK")
</pallas_src>

<mosaic_0001>
module attributes {stable_mosaic.version = 11 : i64} {
  func.func @cell_decoder_kernel(%arg0: memref<16x32xf32, #tpu.memory_space<vmem>>, %arg1: memref<32x16xf32, #tpu.memory_space<vmem>>, %arg2: memref<32x32xf32, #tpu.memory_space<vmem>>, %arg3: memref<64x256xf32, #tpu.memory_space<vmem>>, %arg4: memref<32x256xf32, #tpu.memory_space<vmem>>, %arg5: memref<1x128xf32, #tpu.memory_space<vmem>>, %arg6: memref<1x128xf32, #tpu.memory_space<vmem>>, %arg7: memref<128x64xf32, #tpu.memory_space<vmem>>, %arg8: memref<1x64xf32, #tpu.memory_space<vmem>>, %arg9: memref<64x32xf32, #tpu.memory_space<vmem>>, %arg10: memref<1x32xf32, #tpu.memory_space<vmem>>, %arg11: memref<32x32xf32, #tpu.memory_space<vmem>>, %arg12: memref<32x128xf32, #tpu.memory_space<vmem>>, %arg13: memref<1x128xf32, #tpu.memory_space<vmem>>, %arg14: memref<8x128xf32, #tpu.memory_space<vmem>>, %arg15: memref<8x128xf32, #tpu.memory_space<vmem>>) attributes {dimension_semantics = [], scalar_prefetch = 0 : i64, scratch_operands = 1 : i64, tpu.core_type = #tpu.core_type<tc>} {
    %c0 = arith.constant 0 : index
    %c0_0 = arith.constant 0 : index
    %0 = vector.load %arg0[%c0, %c0_0] : memref<16x32xf32, #tpu.memory_space<vmem>>, vector<16x32xf32>
    %c0_1 = arith.constant 0 : index
    %c0_2 = arith.constant 0 : index
    %1 = vector.load %arg1[%c0_1, %c0_2] : memref<32x16xf32, #tpu.memory_space<vmem>>, vector<32x16xf32>
    %cst = arith.constant dense<0.000000e+00> : vector<32x32xf32>
    %2 = tpu.matmul %1, %0, %cst {dimension_numbers = #tpu.dot_dimension_numbers<[1], [0], [0], [1], [0, 0, 1, 1], [], []>} : vector<32x16xf32>, vector<16x32xf32>, vector<32x32xf32> -> vector<32x32xf32>
    %c0_3 = arith.constant 0 : index
    %c0_4 = arith.constant 0 : index
    %3 = vector.load %arg3[%c0_3, %c0_4] : memref<64x256xf32, #tpu.memory_space<vmem>>, vector<64x256xf32>
    %4 = vector.extract_strided_slice %3 {offsets = [0, 0], sizes = [32, 256], strides = [1, 1]} : vector<64x256xf32> to vector<32x256xf32>
    %cst_5 = arith.constant dense<0.000000e+00> : vector<32x256xf32>
    %5 = tpu.matmul %2, %4, %cst_5 {dimension_numbers = #tpu.dot_dimension_numbers<[1], [0], [0], [1], [0, 0, 1, 1], [], []>} : vector<32x32xf32>, vector<32x256xf32>, vector<32x256xf32> -> vector<32x256xf32>
    %c0_6 = arith.constant 0 : index
    %c0_7 = arith.constant 0 : index
    %6 = vector.load %arg2[%c0_6, %c0_7] : memref<32x32xf32, #tpu.memory_space<vmem>>, vector<32x32xf32>
    %7 = vector.extract_strided_slice %3 {offsets = [32, 0], sizes = [32, 256], strides = [1, 1]} : vector<64x256xf32> to vector<32x256xf32>
    %cst_8 = arith.constant dense<0.000000e+00> : vector<32x256xf32>
    %8 = tpu.matmul %6, %7, %cst_8 {dimension_numbers = #tpu.dot_dimension_numbers<[1], [0], [0], [1], [0, 0, 1, 1], [], []>} : vector<32x32xf32>, vector<32x256xf32>, vector<32x256xf32> -> vector<32x256xf32>
    %9 = arith.addf %5, %8 : vector<32x256xf32>
    %10 = tpu.iota {dimensions = array<i32: 0>} : vector<32x1xi32>
    %c4_i32 = arith.constant 4 : i32
    %c0_i32 = arith.constant 0 : i32
    %11 = arith.cmpi eq, %c4_i32, %c0_i32 : i32
    %c1_i32 = arith.constant 1 : i32
    %12 = arith.select %11, %c1_i32, %c4_i32 : i32
    %13 = vector.broadcast %12 : i32 to vector<32x1xi32>
    %14 = arith.remsi %10, %13 : vector<32x1xi32>
    %c0_i32_9 = arith.constant 0 : i32
    %15 = vector.broadcast %c0_i32_9 : i32 to vector<32x1xi32>
    %16 = arith.cmpi ne, %14, %15 : vector<32x1xi32>
    %c0_i32_10 = arith.constant 0 : i32
    %17 = vector.broadcast %c0_i32_10 : i32 to vector<32x1xi32>
    %18 = arith.cmpi slt, %14, %17 : vector<32x1xi32>
    %c0_i32_11 = arith.constant 0 : i32
    %19 = arith.cmpi slt, %12, %c0_i32_11 : i32
    %20 = vector.broadcast %19 : i1 to vector<32x1xi1>
    %21 = vector.broadcast %20 : vector<32x1xi1> to vector<32x1xi1>
    %22 = arith.xori %18, %21 : vector<32x1xi1>
    %23 = arith.andi %22, %16 : vector<32x1xi1>
    %24 = vector.broadcast %12 : i32 to vector<32x1xi32>
    %25 = arith.addi %14, %24 : vector<32x1xi32>
    %26 = arith.select %23, %25, %14 : vector<32x1xi1>, vector<32x1xi32>
    %c2_i32 = arith.constant 2 : i32
    %27 = vector.broadcast %c2_i32 : i32 to vector<32x1xi32>
    %28 = arith.cmpi sge, %26, %27 : vector<32x1xi32>
    %29 = vector.extract_strided_slice %9 {offsets = [0, 128], sizes = [32, 128], strides = [1, 1]} : vector<32x256xf32> to vector<32x128xf32>
    %c0_12 = arith.constant 0 : index
    %c0_13 = arith.constant 0 : index
    %30 = vector.load %arg6[%c0_12, %c0_13] : memref<1x128xf32, #tpu.memory_space<vmem>>, vector<1x128xf32>
    %31 = vector.broadcast %30 : vector<1x128xf32> to vector<32x128xf32>
    %32 = arith.addf %29, %31 : vector<32x128xf32>
    %33 = vector.extract_strided_slice %9 {offsets = [0, 0], sizes = [32, 128], strides = [1, 1]} : vector<32x256xf32> to vector<32x128xf32>
    %c0_14 = arith.constant 0 : index
    %c0_15 = arith.constant 0 : index
    %34 = vector.load %arg5[%c0_14, %c0_15] : memref<1x128xf32, #tpu.memory_space<vmem>>, vector<1x128xf32>
    %35 = vector.broadcast %34 : vector<1x128xf32> to vector<32x128xf32>
    %36 = arith.addf %33, %35 : vector<32x128xf32>
    %37 = vector.shape_cast %28 : vector<32x1xi1> to vector<32x1xi1>
    %38 = vector.broadcast %37 : vector<32x1xi1> to vector<32x128xi1>
    %39 = arith.select %38, %32, %36 : vector<32x128xi1>, vector<32x128xf32>
    %c0_16 = arith.constant 0 : index
    %c0_17 = arith.constant 0 : index
    %40 = vector.load %arg4[%c0_16, %c0_17] : memref<32x256xf32, #tpu.memory_space<vmem>>, vector<32x256xf32>
    %41 = tpu.iota {dimensions = array<i32: 0>} : vector<4x1xi32>
    %c2_i32_18 = arith.constant 2 : i32
    %42 = vector.broadcast %c2_i32_18 : i32 to vector<4x1xi32>
    %43 = arith.cmpi sge, %41, %42 : vector<4x1xi32>
    %cst_19 = arith.constant 0.000000e+00 : f32
    %44 = vector.broadcast %cst_19 : f32 to vector<4x32xf32>
    %cst_20 = arith.constant 0.000000e+00 : f32
    %45 = vector.broadcast %cst_20 : f32 to vector<4x32xf32>
    %cst_21 = arith.constant dense<0.000000e+00> : vector<4x256xf32>
    %46 = tpu.matmul %44, %40, %cst_21 {dimension_numbers = #tpu.dot_dimension_numbers<[1], [0], [0], [1], [0, 0, 1, 1], [], []>} : vector<4x32xf32>, vector<32x256xf32>, vector<4x256xf32> -> vector<4x256xf32>
    %47 = vector.extract_strided_slice %39 {offsets = [0, 0], sizes = [4, 128], strides = [1, 1]} : vector<32x128xf32> to vector<4x128xf32>
    %48 = vector.extract_strided_slice %46 {offsets = [0, 128], sizes = [4, 128], strides = [1, 1]} : vector<4x256xf32> to vector<4x128xf32>
    %49 = vector.extract_strided_slice %46 {offsets = [0, 0], sizes = [4, 128], strides = [1, 1]} : vector<4x256xf32> to vector<4x128xf32>
    %50 = vector.shape_cast %43 : vector<4x1xi1> to vector<4x1xi1>
    %51 = vector.broadcast %50 : vector<4x1xi1> to vector<4x128xi1>
    %52 = arith.select %51, %48, %49 : vector<4x128xi1>, vector<4x128xf32>
    %53 = arith.addf %47, %52 : vector<4x128xf32>
    %54 = vector.extract_strided_slice %53 {offsets = [0, 0], sizes = [4, 96], strides = [1, 1]} : vector<4x128xf32> to vector<4x96xf32>
    %cst_22 = arith.constant 5.000000e-01 : f32
    %55 = vector.broadcast %cst_22 : f32 to vector<4x96xf32>
    %56 = arith.mulf %55, %54 : vector<4x96xf32>
    %57 = math.tanh %56 : vector<4x96xf32>
    %cst_23 = arith.constant 5.000000e-01 : f32
    %58 = vector.broadcast %cst_23 : f32 to vector<4x96xf32>
    %59 = arith.mulf %58, %57 : vector<4x96xf32>
    %cst_24 = arith.constant 5.000000e-01 : f32
    %60 = vector.broadcast %cst_24 : f32 to vector<4x96xf32>
    %61 = arith.addf %59, %60 : vector<4x96xf32>
    %62 = vector.extract_strided_slice %61 {offsets = [0, 0], sizes = [4, 32], strides = [1, 1]} : vector<4x96xf32> to vector<4x32xf32>
    %63 = vector.extract_strided_slice %61 {offsets = [0, 32], sizes = [4, 32], strides = [1, 1]} : vector<4x96xf32> to vector<4x32xf32>
    %64 = vector.extract_strided_slice %61 {offsets = [0, 64], sizes = [4, 32], strides = [1, 1]} : vector<4x96xf32> to vector<4x32xf32>
    %65 = vector.extract_strided_slice %53 {offsets = [0, 96], sizes = [4, 32], strides = [1, 1]} : vector<4x128xf32> to vector<4x32xf32>
    %66 = math.tanh %65 : vector<4x32xf32>
    %67 = arith.mulf %63, %45 : vector<4x32xf32>
    %68 = arith.mulf %62, %66 : vector<4x32xf32>
    %69 = arith.addf %67, %68 : vector<4x32xf32>
    %70 = math.tanh %69 : vector<4x32xf32>
    %71 = arith.mulf %64, %70 : vector<4x32xf32>
    %72 = vector.extract_strided_slice %71 {offsets = [0, 0], sizes = [1, 32], strides = [1, 1]} : vector<4x32xf32> to vector<1x32xf32>
    %c0_25 = arith.constant 0 : index
    %c0_26 = arith.constant 0 : index
    %73 = vector.load %arg15[%c0_25, %c0_26] : memref<8x128xf32, #tpu.memory_space<vmem>>, vector<1x32xf32>
    tpu.vector_store %arg15[%c0_25, %c0_26], %72 {strides = array<i32>} : memref<8x128xf32, #tpu.memory_space<vmem>>, vector<1x32xf32>,
    %74 = vector.extract_strided_slice %71 {offsets = [2, 0], sizes = [1, 32], strides = [1, 1]} : vector<4x32xf32> to vector<1x32xf32>
    %c7 = arith.constant 7 : index
    %c32 = arith.constant 32 : index
    %75 = vector.load %arg15[%c7, %c32] : memref<8x128xf32, #tpu.memory_space<vmem>>, vector<1x32xf32>
    tpu.vector_store %arg15[%c7, %c32], %74 {strides = array<i32>} : memref<8x128xf32, #tpu.memory_space<vmem>>, vector<1x32xf32>,
    %76 = vector.extract_strided_slice %71 {offsets = [1, 0], sizes = [1, 32], strides = [1, 1]} : vector<4x32xf32> to vector<1x32xf32>
    %c0_27 = arith.constant 0 : index
    %c64 = arith.constant 64 : index
    %77 = vector.load %arg15[%c0_27, %c64] : memref<8x128xf32, #tpu.memory_space<vmem>>, vector<1x32xf32>
    tpu.vector_store %arg15[%c0_27, %c64], %76 {strides = array<i32>} : memref<8x128xf32, #tpu.memory_space<vmem>>, vector<1x32xf32>,
    %78 = vector.extract_strided_slice %71 {offsets = [3, 0], sizes = [1, 32], strides = [1, 1]} : vector<4x32xf32> to vector<1x32xf32>
    %c7_28 = arith.constant 7 : index
    %c96 = arith.constant 96 : index
    %79 = vector.load %arg15[%c7_28, %c96] : memref<8x128xf32, #tpu.memory_space<vmem>>, vector<1x32xf32>
    tpu.vector_store %arg15[%c7_28, %c96], %78 {strides = array<i32>} : memref<8x128xf32, #tpu.memory_space<vmem>>, vector<1x32xf32>,
    %cst_29 = arith.constant dense<0.000000e+00> : vector<4x256xf32>
    %80 = tpu.matmul %71, %40, %cst_29 {dimension_numbers = #tpu.dot_dimension_numbers<[1], [0], [0], [1], [0, 0, 1, 1], [], []>} : vector<4x32xf32>, vector<32x256xf32>, vector<4x256xf32> -> vector<4x256xf32>
    %81 = vector.extract_strided_slice %39 {offsets = [4, 0], sizes = [4, 128], strides = [1, 1]} : vector<32x128xf32> to vector<4x128xf32>
    %82 = vector.extract_strided_slice %80 {offsets = [0, 128], sizes = [4, 128], strides = [1, 1]} : vector<4x256xf32> to vector<4x128xf32>
    %83 = vector.extract_strided_slice %80 {offsets = [0, 0], sizes = [4, 128], strides = [1, 1]} : vector<4x256xf32> to vector<4x128xf32>
    %84 = vector.shape_cast %43 : vector<4x1xi1> to vector<4x1xi1>
    %85 = vector.broadcast %84 : vector<4x1xi1> to vector<4x128xi1>
    %86 = arith.select %85, %82, %83 : vector<4x128xi1>, vector<4x128xf32>
    %87 = arith.addf %81, %86 : vector<4x128xf32>
    %88 = vector.extract_strided_slice %87 {offsets = [0, 0], sizes = [4, 96], strides = [1, 1]} : vector<4x128xf32> to vector<4x96xf32>
    %cst_30 = arith.constant 5.000000e-01 : f32
    %89 = vector.broadcast %cst_30 : f32 to vector<4x96xf32>
    %90 = arith.mulf %89, %88 : vector<4x96xf32>
    %91 = math.tanh %90 : vector<4x96xf32>
    %cst_31 = arith.constant 5.000000e-01 : f32
    %92 = vector.broadcast %cst_31 : f32 to vector<4x96xf32>
    %93 = arith.mulf %92, %91 : vector<4x96xf32>
    %cst_32 = arith.constant 5.000000e-01 : f32
    %94 = vector.broadcast %cst_32 : f32 to vector<4x96xf32>
    %95 = arith.addf %93, %94 : vector<4x96xf32>
    %96 = vector.extract_strided_slice %95 {offsets = [0, 0], sizes = [4, 32], strides = [1, 1]} : vector<4x96xf32> to vector<4x32xf32>
    %97 = vector.extract_strided_slice %95 {offsets = [0, 32], sizes = [4, 32], strides = [1, 1]} : vector<4x96xf32> to vector<4x32xf32>
    %98 = vector.extract_strided_slice %95 {offsets = [0, 64], sizes = [4, 32], strides = [1, 1]} : vector<4x96xf32> to vector<4x32xf32>
    %99 = vector.extract_strided_slice %87 {offsets = [0, 96], sizes = [4, 32], strides = [1, 1]} : vector<4x128xf32> to vector<4x32xf32>
    %100 = math.tanh %99 : vector<4x32xf32>
    %101 = arith.mulf %97, %69 : vector<4x32xf32>
    %102 = arith.mulf %96, %100 : vector<4x32xf32>
    %103 = arith.addf %101, %102 : vector<4x32xf32>
    %104 = math.tanh %103 : vector<4x32xf32>
    %105 = arith.mulf %98, %104 : vector<4x32xf32>
    %106 = vector.extract_strided_slice %105 {offsets = [0, 0], sizes = [1, 32], strides = [1, 1]} : vector<4x32xf32> to vector<1x32xf32>
    %c1 = arith.constant 1 : index
    %c0_33 = arith.constant 0 : index
    %107 = vector.load %arg15[%c1, %c0_33] : memref<8x128xf32, #tpu.memory_space<vmem>>, vector<1x32xf32>
    tpu.vector_store %arg15[%c1, %c0_33], %106 {strides = array<i32>} : memref<8x128xf32, #tpu.memory_space<vmem>>, vector<1x32xf32>,
    %108 = vector.extract_strided_slice %105 {offsets = [2, 0], sizes = [1, 32], strides = [1, 1]} : vector<4x32xf32> to vector<1x32xf32>
    %c6 = arith.constant 6 : index
    %c32_34 = arith.constant 32 : index
    %109 = vector.load %arg15[%c6, %c32_34] : memref<8x128xf32, #tpu.memory_space<vmem>>, vector<1x32xf32>
    tpu.vector_store %arg15[%c6, %c32_34], %108 {strides = array<i32>} : memref<8x128xf32, #tpu.memory_space<vmem>>, vector<1x32xf32>,
    %110 = vector.extract_strided_slice %105 {offsets = [1, 0], sizes = [1, 32], strides = [1, 1]} : vector<4x32xf32> to vector<1x32xf32>
    %c1_35 = arith.constant 1 : index
    %c64_36 = arith.constant 64 : index
    %111 = vector.load %arg15[%c1_35, %c64_36] : memref<8x128xf32, #tpu.memory_space<vmem>>, vector<1x32xf32>
    tpu.vector_store %arg15[%c1_35, %c64_36], %110 {strides = array<i32>} : memref<8x128xf32, #tpu.memory_space<vmem>>, vector<1x32xf32>,
    %112 = vector.extract_strided_slice %105 {offsets = [3, 0], sizes = [1, 32], strides = [1, 1]} : vector<4x32xf32> to vector<1x32xf32>
    %c6_37 = arith.constant 6 : index
    %c96_38 = arith.constant 96 : index
    %113 = vector.load %arg15[%c6_37, %c96_38] : memref<8x128xf32, #tpu.memory_space<vmem>>, vector<1x32xf32>
    tpu.vector_store %arg15[%c6_37, %c96_38], %112 {strides = array<i32>} : memref<8x128xf32, #tpu.memory_space<vmem>>, vector<1x32xf32>,
    %cst_39 = arith.constant dense<0.000000e+00> : vector<4x256xf32>
    %114 = tpu.matmul %105, %40, %cst_39 {dimension_numbers = #tpu.dot_dimension_numbers<[1], [0], [0], [1], [0, 0, 1, 1], [], []>} : vector<4x32xf32>, vector<32x256xf32>, vector<4x256xf32> -> vector<4x256xf32>
    %115 = vector.extract_strided_slice %39 {offsets = [8, 0], sizes = [4, 128], strides = [1, 1]} : vector<32x128xf32> to vector<4x128xf32>
    %116 = vector.extract_strided_slice %114 {offsets = [0, 128], sizes = [4, 128], strides = [1, 1]} : vector<4x256xf32> to vector<4x128xf32>
    %117 = vector.extract_strided_slice %114 {offsets = [0, 0], sizes = [4, 128], strides = [1, 1]} : vector<4x256xf32> to vector<4x128xf32>
    %118 = vector.shape_cast %43 : vector<4x1xi1> to vector<4x1xi1>
    %119 = vector.broadcast %118 : vector<4x1xi1> to vector<4x128xi1>
    %120 = arith.select %119, %116, %117 : vector<4x128xi1>, vector<4x128xf32>
    %121 = arith.addf %115, %120 : vector<4x128xf32>
    %122 = vector.extract_strided_slice %121 {offsets = [0, 0], sizes = [4, 96], strides = [1, 1]} : vector<4x128xf32> to vector<4x96xf32>
    %cst_40 = arith.constant 5.000000e-01 : f32
    %123 = vector.broadcast %cst_40 : f32 to vector<4x96xf32>
    %124 = arith.mulf %123, %122 : vector<4x96xf32>
    %125 = math.tanh %124 : vector<4x96xf32>
    %cst_41 = arith.constant 5.000000e-01 : f32
    %126 = vector.broadcast %cst_41 : f32 to vector<4x96xf32>
    %127 = arith.mulf %126, %125 : vector<4x96xf32>
    %cst_42 = arith.constant 5.000000e-01 : f32
    %128 = vector.broadcast %cst_42 : f32 to vector<4x96xf32>
    %129 = arith.addf %127, %128 : vector<4x96xf32>
    %130 = vector.extract_strided_slice %129 {offsets = [0, 0], sizes = [4, 32], strides = [1, 1]} : vector<4x96xf32> to vector<4x32xf32>
    %131 = vector.extract_strided_slice %129 {offsets = [0, 32], sizes = [4, 32], strides = [1, 1]} : vector<4x96xf32> to vector<4x32xf32>
    %132 = vector.extract_strided_slice %129 {offsets = [0, 64], sizes = [4, 32], strides = [1, 1]} : vector<4x96xf32> to vector<4x32xf32>
    %133 = vector.extract_strided_slice %121 {offsets = [0, 96], sizes = [4, 32], strides = [1, 1]} : vector<4x128xf32> to vector<4x32xf32>
    %134 = math.tanh %133 : vector<4x32xf32>
    %135 = arith.mulf %131, %103 : vector<4x32xf32>
    %136 = arith.mulf %130, %134 : vector<4x32xf32>
    %137 = arith.addf %135, %136 : vector<4x32xf32>
    %138 = math.tanh %137 : vector<4x32xf32>
    %139 = arith.mulf %132, %138 : vector<4x32xf32>
    %140 = vector.extract_strided_slice %139 {offsets = [0, 0], sizes = [1, 32], strides = [1, 1]} : vector<4x32xf32> to vector<1x32xf32>
    %c2 = arith.constant 2 : index
    %c0_43 = arith.constant 0 : index
    %141 = vector.load %arg15[%c2, %c0_43] : memref<8x128xf32, #tpu.memory_space<vmem>>, vector<1x32xf32>
    tpu.vector_store %arg15[%c2, %c0_43], %140 {strides = array<i32>} : memref<8x128xf32, #tpu.memory_space<vmem>>, vector<1x32xf32>,
    %142 = vector.extract_strided_slice %139 {offsets = [2, 0], sizes = [1, 32], strides = [1, 1]} : vector<4x32xf32> to vector<1x32xf32>
    %c5 = arith.constant 5 : index
    %c32_44 = arith.constant 32 : index
    %143 = vector.load %arg15[%c5, %c32_44] : memref<8x128xf32, #tpu.memory_space<vmem>>, vector<1x32xf32>
    tpu.vector_store %arg15[%c5, %c32_44], %142 {strides = array<i32>} : memref<8x128xf32, #tpu.memory_space<vmem>>, vector<1x32xf32>,
    %144 = vector.extract_strided_slice %139 {offsets = [1, 0], sizes = [1, 32], strides = [1, 1]} : vector<4x32xf32> to vector<1x32xf32>
    %c2_45 = arith.constant 2 : index
    %c64_46 = arith.constant 64 : index
    %145 = vector.load %arg15[%c2_45, %c64_46] : memref<8x128xf32, #tpu.memory_space<vmem>>, vector<1x32xf32>
    tpu.vector_store %arg15[%c2_45, %c64_46], %144 {strides = array<i32>} : memref<8x128xf32, #tpu.memory_space<vmem>>, vector<1x32xf32>,
    %146 = vector.extract_strided_slice %139 {offsets = [3, 0], sizes = [1, 32], strides = [1, 1]} : vector<4x32xf32> to vector<1x32xf32>
    %c5_47 = arith.constant 5 : index
    %c96_48 = arith.constant 96 : index
    %147 = vector.load %arg15[%c5_47, %c96_48] : memref<8x128xf32, #tpu.memory_space<vmem>>, vector<1x32xf32>
    tpu.vector_store %arg15[%c5_47, %c96_48], %146 {strides = array<i32>} : memref<8x128xf32, #tpu.memory_space<vmem>>, vector<1x32xf32>,
    %cst_49 = arith.constant dense<0.000000e+00> : vector<4x256xf32>
    %148 = tpu.matmul %139, %40, %cst_49 {dimension_numbers = #tpu.dot_dimension_numbers<[1], [0], [0], [1], [0, 0, 1, 1], [], []>} : vector<4x32xf32>, vector<32x256xf32>, vector<4x256xf32> -> vector<4x256xf32>
    %149 = vector.extract_strided_slice %39 {offsets = [12, 0], sizes = [4, 128], strides = [1, 1]} : vector<32x128xf32> to vector<4x128xf32>
    %150 = vector.extract_strided_slice %148 {offsets = [0, 128], sizes = [4, 128], strides = [1, 1]} : vector<4x256xf32> to vector<4x128xf32>
    %151 = vector.extract_strided_slice %148 {offsets = [0, 0], sizes = [4, 128], strides = [1, 1]} : vector<4x256xf32> to vector<4x128xf32>
    %152 = vector.shape_cast %43 : vector<4x1xi1> to vector<4x1xi1>
    %153 = vector.broadcast %152 : vector<4x1xi1> to vector<4x128xi1>
    %154 = arith.select %153, %150, %151 : vector<4x128xi1>, vector<4x128xf32>
    %155 = arith.addf %149, %154 : vector<4x128xf32>
    %156 = vector.extract_strided_slice %155 {offsets = [0, 0], sizes = [4, 96], strides = [1, 1]} : vector<4x128xf32> to vector<4x96xf32>
    %cst_50 = arith.constant 5.000000e-01 : f32
    %157 = vector.broadcast %cst_50 : f32 to vector<4x96xf32>
    %158 = arith.mulf %157, %156 : vector<4x96xf32>
    %159 = math.tanh %158 : vector<4x96xf32>
    %cst_51 = arith.constant 5.000000e-01 : f32
    %160 = vector.broadcast %cst_51 : f32 to vector<4x96xf32>
    %161 = arith.mulf %160, %159 : vector<4x96xf32>
    %cst_52 = arith.constant 5.000000e-01 : f32
    %162 = vector.broadcast %cst_52 : f32 to vector<4x96xf32>
    %163 = arith.addf %161, %162 : vector<4x96xf32>
    %164 = vector.extract_strided_slice %163 {offsets = [0, 0], sizes = [4, 32], strides = [1, 1]} : vector<4x96xf32> to vector<4x32xf32>
    %165 = vector.extract_strided_slice %163 {offsets = [0, 32], sizes = [4, 32], strides = [1, 1]} : vector<4x96xf32> to vector<4x32xf32>
    %166 = vector.extract_strided_slice %163 {offsets = [0, 64], sizes = [4, 32], strides = [1, 1]} : vector<4x96xf32> to vector<4x32xf32>
    %167 = vector.extract_strided_slice %155 {offsets = [0, 96], sizes = [4, 32], strides = [1, 1]} : vector<4x128xf32> to vector<4x32xf32>
    %168 = math.tanh %167 : vector<4x32xf32>
    %169 = arith.mulf %165, %137 : vector<4x32xf32>
    %170 = arith.mulf %164, %168 : vector<4x32xf32>
    %171 = arith.addf %169, %170 : vector<4x32xf32>
    %172 = math.tanh %171 : vector<4x32xf32>
    %173 = arith.mulf %166, %172 : vector<4x32xf32>
    %174 = vector.extract_strided_slice %173 {offsets = [0, 0], sizes = [1, 32], strides = [1, 1]} : vector<4x32xf32> to vector<1x32xf32>
    %c3 = arith.constant 3 : index
    %c0_53 = arith.constant 0 : index
    %175 = vector.load %arg15[%c3, %c0_53] : memref<8x128xf32, #tpu.memory_space<vmem>>, vector<1x32xf32>
    tpu.vector_store %arg15[%c3, %c0_53], %174 {strides = array<i32>} : memref<8x128xf32, #tpu.memory_space<vmem>>, vector<1x32xf32>,
    %176 = vector.extract_strided_slice %173 {offsets = [2, 0], sizes = [1, 32], strides = [1, 1]} : vector<4x32xf32> to vector<1x32xf32>
    %c4 = arith.constant 4 : index
    %c32_54 = arith.constant 32 : index
    %177 = vector.load %arg15[%c4, %c32_54] : memref<8x128xf32, #tpu.memory_space<vmem>>, vector<1x32xf32>
    tpu.vector_store %arg15[%c4, %c32_54], %176 {strides = array<i32>} : memref<8x128xf32, #tpu.memory_space<vmem>>, vector<1x32xf32>,
    %178 = vector.extract_strided_slice %173 {offsets = [1, 0], sizes = [1, 32], strides = [1, 1]} : vector<4x32xf32> to vector<1x32xf32>
    %c3_55 = arith.constant 3 : index
    %c64_56 = arith.constant 64 : index
    %179 = vector.load %arg15[%c3_55, %c64_56] : memref<8x128xf32, #tpu.memory_space<vmem>>, vector<1x32xf32>
    tpu.vector_store %arg15[%c3_55, %c64_56], %178 {strides = array<i32>} : memref<8x128xf32, #tpu.memory_space<vmem>>, vector<1x32xf32>,
    %180 = vector.extract_strided_slice %173 {offsets = [3, 0], sizes = [1, 32], strides = [1, 1]} : vector<4x32xf32> to vector<1x32xf32>
    %c4_57 = arith.constant 4 : index
    %c96_58 = arith.constant 96 : index
    %181 = vector.load %arg15[%c4_57, %c96_58] : memref<8x128xf32, #tpu.memory_space<vmem>>, vector<1x32xf32>
    tpu.vector_store %arg15[%c4_57, %c96_58], %180 {strides = array<i32>} : memref<8x128xf32, #tpu.memory_space<vmem>>, vector<1x32xf32>,
    %cst_59 = arith.constant dense<0.000000e+00> : vector<4x256xf32>
    %182 = tpu.matmul %173, %40, %cst_59 {dimension_numbers = #tpu.dot_dimension_numbers<[1], [0], [0], [1], [0, 0, 1, 1], [], []>} : vector<4x32xf32>, vector<32x256xf32>, vector<4x256xf32> -> vector<4x256xf32>
    %183 = vector.extract_strided_slice %39 {offsets = [16, 0], sizes = [4, 128], strides = [1, 1]} : vector<32x128xf32> to vector<4x128xf32>
    %184 = vector.extract_strided_slice %182 {offsets = [0, 128], sizes = [4, 128], strides = [1, 1]} : vector<4x256xf32> to vector<4x128xf32>
    %185 = vector.extract_strided_slice %182 {offsets = [0, 0], sizes = [4, 128], strides = [1, 1]} : vector<4x256xf32> to vector<4x128xf32>
    %186 = vector.shape_cast %43 : vector<4x1xi1> to vector<4x1xi1>
    %187 = vector.broadcast %186 : vector<4x1xi1> to vector<4x128xi1>
    %188 = arith.select %187, %184, %185 : vector<4x128xi1>, vector<4x128xf32>
    %189 = arith.addf %183, %188 : vector<4x128xf32>
    %190 = vector.extract_strided_slice %189 {offsets = [0, 0], sizes = [4, 96], strides = [1, 1]} : vector<4x128xf32> to vector<4x96xf32>
    %cst_60 = arith.constant 5.000000e-01 : f32
    %191 = vector.broadcast %cst_60 : f32 to vector<4x96xf32>
    %192 = arith.mulf %191, %190 : vector<4x96xf32>
    %193 = math.tanh %192 : vector<4x96xf32>
    %cst_61 = arith.constant 5.000000e-01 : f32
    %194 = vector.broadcast %cst_61 : f32 to vector<4x96xf32>
    %195 = arith.mulf %194, %193 : vector<4x96xf32>
    %cst_62 = arith.constant 5.000000e-01 : f32
    %196 = vector.broadcast %cst_62 : f32 to vector<4x96xf32>
    %197 = arith.addf %195, %196 : vector<4x96xf32>
    %198 = vector.extract_strided_slice %197 {offsets = [0, 0], sizes = [4, 32], strides = [1, 1]} : vector<4x96xf32> to vector<4x32xf32>
    %199 = vector.extract_strided_slice %197 {offsets = [0, 32], sizes = [4, 32], strides = [1, 1]} : vector<4x96xf32> to vector<4x32xf32>
    %200 = vector.extract_strided_slice %197 {offsets = [0, 64], sizes = [4, 32], strides = [1, 1]} : vector<4x96xf32> to vector<4x32xf32>
    %201 = vector.extract_strided_slice %189 {offsets = [0, 96], sizes = [4, 32], strides = [1, 1]} : vector<4x128xf32> to vector<4x32xf32>
    %202 = math.tanh %201 : vector<4x32xf32>
    %203 = arith.mulf %199, %171 : vector<4x32xf32>
    %204 = arith.mulf %198, %202 : vector<4x32xf32>
    %205 = arith.addf %203, %204 : vector<4x32xf32>
    %206 = math.tanh %205 : vector<4x32xf32>
    %207 = arith.mulf %200, %206 : vector<4x32xf32>
    %208 = vector.extract_strided_slice %207 {offsets = [0, 0], sizes = [1, 32], strides = [1, 1]} : vector<4x32xf32> to vector<1x32xf32>
    %c4_63 = arith.constant 4 : index
    %c0_64 = arith.constant 0 : index
    %209 = vector.load %arg15[%c4_63, %c0_64] : memref<8x128xf32, #tpu.memory_space<vmem>>, vector<1x32xf32>
    tpu.vector_store %arg15[%c4_63, %c0_64], %208 {strides = array<i32>} : memref<8x128xf32, #tpu.memory_space<vmem>>, vector<1x32xf32>,
    %210 = vector.extract_strided_slice %207 {offsets = [2, 0], sizes = [1, 32], strides = [1, 1]} : vector<4x32xf32> to vector<1x32xf32>
    %c3_65 = arith.constant 3 : index
    %c32_66 = arith.constant 32 : index
    %211 = vector.load %arg15[%c3_65, %c32_66] : memref<8x128xf32, #tpu.memory_space<vmem>>, vector<1x32xf32>
    tpu.vector_store %arg15[%c3_65, %c32_66], %210 {strides = array<i32>} : memref<8x128xf32, #tpu.memory_space<vmem>>, vector<1x32xf32>,
    %212 = vector.extract_strided_slice %207 {offsets = [1, 0], sizes = [1, 32], strides = [1, 1]} : vector<4x32xf32> to vector<1x32xf32>
    %c4_67 = arith.constant 4 : index
    %c64_68 = arith.constant 64 : index
    %213 = vector.load %arg15[%c4_67, %c64_68] : memref<8x128xf32, #tpu.memory_space<vmem>>, vector<1x32xf32>
    tpu.vector_store %arg15[%c4_67, %c64_68], %212 {strides = array<i32>} : memref<8x128xf32, #tpu.memory_space<vmem>>, vector<1x32xf32>,
    %214 = vector.extract_strided_slice %207 {offsets = [3, 0], sizes = [1, 32], strides = [1, 1]} : vector<4x32xf32> to vector<1x32xf32>
    %c3_69 = arith.constant 3 : index
    %c96_70 = arith.constant 96 : index
    %215 = vector.load %arg15[%c3_69, %c96_70] : memref<8x128xf32, #tpu.memory_space<vmem>>, vector<1x32xf32>
    tpu.vector_store %arg15[%c3_69, %c96_70], %214 {strides = array<i32>} : memref<8x128xf32, #tpu.memory_space<vmem>>, vector<1x32xf32>,
    %cst_71 = arith.constant dense<0.000000e+00> : vector<4x256xf32>
    %216 = tpu.matmul %207, %40, %cst_71 {dimension_numbers = #tpu.dot_dimension_numbers<[1], [0], [0], [1], [0, 0, 1, 1], [], []>} : vector<4x32xf32>, vector<32x256xf32>, vector<4x256xf32> -> vector<4x256xf32>
    %217 = vector.extract_strided_slice %39 {offsets = [20, 0], sizes = [4, 128], strides = [1, 1]} : vector<32x128xf32> to vector<4x128xf32>
    %218 = vector.extract_strided_slice %216 {offsets = [0, 128], sizes = [4, 128], strides = [1, 1]} : vector<4x256xf32> to vector<4x128xf32>
    %219 = vector.extract_strided_slice %216 {offsets = [0, 0], sizes = [4, 128], strides = [1, 1]} : vector<4x256xf32> to vector<4x128xf32>
    %220 = vector.shape_cast %43 : vector<4x1xi1> to vector<4x1xi1>
    %221 = vector.broadcast %220 : vector<4x1xi1> to vector<4x128xi1>
    %222 = arith.select %221, %218, %219 : vector<4x128xi1>, vector<4x128xf32>
    %223 = arith.addf %217, %222 : vector<4x128xf32>
    %224 = vector.extract_strided_slice %223 {offsets = [0, 0], sizes = [4, 96], strides = [1, 1]} : vector<4x128xf32> to vector<4x96xf32>
    %cst_72 = arith.constant 5.000000e-01 : f32
    %225 = vector.broadcast %cst_72 : f32 to vector<4x96xf32>
    %226 = arith.mulf %225, %224 : vector<4x96xf32>
    %227 = math.tanh %226 : vector<4x96xf32>
    %cst_73 = arith.constant 5.000000e-01 : f32
    %228 = vector.broadcast %cst_73 : f32 to vector<4x96xf32>
    %229 = arith.mulf %228, %227 : vector<4x96xf32>
    %cst_74 = arith.constant 5.000000e-01 : f32
    %230 = vector.broadcast %cst_74 : f32 to vector<4x96xf32>
    %231 = arith.addf %229, %230 : vector<4x96xf32>
    %232 = vector.extract_strided_slice %231 {offsets = [0, 0], sizes = [4, 32], strides = [1, 1]} : vector<4x96xf32> to vector<4x32xf32>
    %233 = vector.extract_strided_slice %231 {offsets = [0, 32], sizes = [4, 32], strides = [1, 1]} : vector<4x96xf32> to vector<4x32xf32>
    %234 = vector.extract_strided_slice %231 {offsets = [0, 64], sizes = [4, 32], strides = [1, 1]} : vector<4x96xf32> to vector<4x32xf32>
    %235 = vector.extract_strided_slice %223 {offsets = [0, 96], sizes = [4, 32], strides = [1, 1]} : vector<4x128xf32> to vector<4x32xf32>
    %236 = math.tanh %235 : vector<4x32xf32>
    %237 = arith.mulf %233, %205 : vector<4x32xf32>
    %238 = arith.mulf %232, %236 : vector<4x32xf32>
    %239 = arith.addf %237, %238 : vector<4x32xf32>
    %240 = math.tanh %239 : vector<4x32xf32>
    %241 = arith.mulf %234, %240 : vector<4x32xf32>
    %242 = vector.extract_strided_slice %241 {offsets = [0, 0], sizes = [1, 32], strides = [1, 1]} : vector<4x32xf32> to vector<1x32xf32>
    %c5_75 = arith.constant 5 : index
    %c0_76 = arith.constant 0 : index
    %243 = vector.load %arg15[%c5_75, %c0_76] : memref<8x128xf32, #tpu.memory_space<vmem>>, vector<1x32xf32>
    tpu.vector_store %arg15[%c5_75, %c0_76], %242 {strides = array<i32>} : memref<8x128xf32, #tpu.memory_space<vmem>>, vector<1x32xf32>,
    %244 = vector.extract_strided_slice %241 {offsets = [2, 0], sizes = [1, 32], strides = [1, 1]} : vector<4x32xf32> to vector<1x32xf32>
    %c2_77 = arith.constant 2 : index
    %c32_78 = arith.constant 32 : index
    %245 = vector.load %arg15[%c2_77, %c32_78] : memref<8x128xf32, #tpu.memory_space<vmem>>, vector<1x32xf32>
    tpu.vector_store %arg15[%c2_77, %c32_78], %244 {strides = array<i32>} : memref<8x128xf32, #tpu.memory_space<vmem>>, vector<1x32xf32>,
    %246 = vector.extract_strided_slice %241 {offsets = [1, 0], sizes = [1, 32], strides = [1, 1]} : vector<4x32xf32> to vector<1x32xf32>
    %c5_79 = arith.constant 5 : index
    %c64_80 = arith.constant 64 : index
    %247 = vector.load %arg15[%c5_79, %c64_80] : memref<8x128xf32, #tpu.memory_space<vmem>>, vector<1x32xf32>
    tpu.vector_store %arg15[%c5_79, %c64_80], %246 {strides = array<i32>} : memref<8x128xf32, #tpu.memory_space<vmem>>, vector<1x32xf32>,
    %248 = vector.extract_strided_slice %241 {offsets = [3, 0], sizes = [1, 32], strides = [1, 1]} : vector<4x32xf32> to vector<1x32xf32>
    %c2_81 = arith.constant 2 : index
    %c96_82 = arith.constant 96 : index
    %249 = vector.load %arg15[%c2_81, %c96_82] : memref<8x128xf32, #tpu.memory_space<vmem>>, vector<1x32xf32>
    tpu.vector_store %arg15[%c2_81, %c96_82], %248 {strides = array<i32>} : memref<8x128xf32, #tpu.memory_space<vmem>>, vector<1x32xf32>,
    %cst_83 = arith.constant dense<0.000000e+00> : vector<4x256xf32>
    %250 = tpu.matmul %241, %40, %cst_83 {dimension_numbers = #tpu.dot_dimension_numbers<[1], [0], [0], [1], [0, 0, 1, 1], [], []>} : vector<4x32xf32>, vector<32x256xf32>, vector<4x256xf32> -> vector<4x256xf32>
    %251 = vector.extract_strided_slice %39 {offsets = [24, 0], sizes = [4, 128], strides = [1, 1]} : vector<32x128xf32> to vector<4x128xf32>
    %252 = vector.extract_strided_slice %250 {offsets = [0, 128], sizes = [4, 128], strides = [1, 1]} : vector<4x256xf32> to vector<4x128xf32>
    %253 = vector.extract_strided_slice %250 {offsets = [0, 0], sizes = [4, 128], strides = [1, 1]} : vector<4x256xf32> to vector<4x128xf32>
    %254 = vector.shape_cast %43 : vector<4x1xi1> to vector<4x1xi1>
    %255 = vector.broadcast %254 : vector<4x1xi1> to vector<4x128xi1>
    %256 = arith.select %255, %252, %253 : vector<4x128xi1>, vector<4x128xf32>
    %257 = arith.addf %251, %256 : vector<4x128xf32>
    %258 = vector.extract_strided_slice %257 {offsets = [0, 0], sizes = [4, 96], strides = [1, 1]} : vector<4x128xf32> to vector<4x96xf32>
    %cst_84 = arith.constant 5.000000e-01 : f32
    %259 = vector.broadcast %cst_84 : f32 to vector<4x96xf32>
    %260 = arith.mulf %259, %258 : vector<4x96xf32>
    %261 = math.tanh %260 : vector<4x96xf32>
    %cst_85 = arith.constant 5.000000e-01 : f32
    %262 = vector.broadcast %cst_85 : f32 to vector<4x96xf32>
    %263 = arith.mulf %262, %261 : vector<4x96xf32>
    %cst_86 = arith.constant 5.000000e-01 : f32
    %264 = vector.broadcast %cst_86 : f32 to vector<4x96xf32>
    %265 = arith.addf %263, %264 : vector<4x96xf32>
    %266 = vector.extract_strided_slice %265 {offsets = [0, 0], sizes = [4, 32], strides = [1, 1]} : vector<4x96xf32> to vector<4x32xf32>
    %267 = vector.extract_strided_slice %265 {offsets = [0, 32], sizes = [4, 32], strides = [1, 1]} : vector<4x96xf32> to vector<4x32xf32>
    %268 = vector.extract_strided_slice %265 {offsets = [0, 64], sizes = [4, 32], strides = [1, 1]} : vector<4x96xf32> to vector<4x32xf32>
    %269 = vector.extract_strided_slice %257 {offsets = [0, 96], sizes = [4, 32], strides = [1, 1]} : vector<4x128xf32> to vector<4x32xf32>
    %270 = math.tanh %269 : vector<4x32xf32>
    %271 = arith.mulf %267, %239 : vector<4x32xf32>
    %272 = arith.mulf %266, %270 : vector<4x32xf32>
    %273 = arith.addf %271, %272 : vector<4x32xf32>
    %274 = math.tanh %273 : vector<4x32xf32>
    %275 = arith.mulf %268, %274 : vector<4x32xf32>
    %276 = vector.extract_strided_slice %275 {offsets = [0, 0], sizes = [1, 32], strides = [1, 1]} : vector<4x32xf32> to vector<1x32xf32>
    %c6_87 = arith.constant 6 : index
    %c0_88 = arith.constant 0 : index
    %277 = vector.load %arg15[%c6_87, %c0_88] : memref<8x128xf32, #tpu.memory_space<vmem>>, vector<1x32xf32>
    tpu.vector_store %arg15[%c6_87, %c0_88], %276 {strides = array<i32>} : memref<8x128xf32, #tpu.memory_space<vmem>>, vector<1x32xf32>,
    %278 = vector.extract_strided_slice %275 {offsets = [2, 0], sizes = [1, 32], strides = [1, 1]} : vector<4x32xf32> to vector<1x32xf32>
    %c1_89 = arith.constant 1 : index
    %c32_90 = arith.constant 32 : index
    %279 = vector.load %arg15[%c1_89, %c32_90] : memref<8x128xf32, #tpu.memory_space<vmem>>, vector<1x32xf32>
    tpu.vector_store %arg15[%c1_89, %c32_90], %278 {strides = array<i32>} : memref<8x128xf32, #tpu.memory_space<vmem>>, vector<1x32xf32>,
    %280 = vector.extract_strided_slice %275 {offsets = [1, 0], sizes = [1, 32], strides = [1, 1]} : vector<4x32xf32> to vector<1x32xf32>
    %c6_91 = arith.constant 6 : index
    %c64_92 = arith.constant 64 : index
    %281 = vector.load %arg15[%c6_91, %c64_92] : memref<8x128xf32, #tpu.memory_space<vmem>>, vector<1x32xf32>
    tpu.vector_store %arg15[%c6_91, %c64_92], %280 {strides = array<i32>} : memref<8x128xf32, #tpu.memory_space<vmem>>, vector<1x32xf32>,
    %282 = vector.extract_strided_slice %275 {offsets = [3, 0], sizes = [1, 32], strides = [1, 1]} : vector<4x32xf32> to vector<1x32xf32>
    %c1_93 = arith.constant 1 : index
    %c96_94 = arith.constant 96 : index
    %283 = vector.load %arg15[%c1_93, %c96_94] : memref<8x128xf32, #tpu.memory_space<vmem>>, vector<1x32xf32>
    tpu.vector_store %arg15[%c1_93, %c96_94], %282 {strides = array<i32>} : memref<8x128xf32, #tpu.memory_space<vmem>>, vector<1x32xf32>,
    %cst_95 = arith.constant dense<0.000000e+00> : vector<4x256xf32>
    %284 = tpu.matmul %275, %40, %cst_95 {dimension_numbers = #tpu.dot_dimension_numbers<[1], [0], [0], [1], [0, 0, 1, 1], [], []>} : vector<4x32xf32>, vector<32x256xf32>, vector<4x256xf32> -> vector<4x256xf32>
    %285 = vector.extract_strided_slice %39 {offsets = [28, 0], sizes = [4, 128], strides = [1, 1]} : vector<32x128xf32> to vector<4x128xf32>
    %286 = vector.extract_strided_slice %284 {offsets = [0, 128], sizes = [4, 128], strides = [1, 1]} : vector<4x256xf32> to vector<4x128xf32>
    %287 = vector.extract_strided_slice %284 {offsets = [0, 0], sizes = [4, 128], strides = [1, 1]} : vector<4x256xf32> to vector<4x128xf32>
    %288 = vector.shape_cast %43 : vector<4x1xi1> to vector<4x1xi1>
    %289 = vector.broadcast %288 : vector<4x1xi1> to vector<4x128xi1>
    %290 = arith.select %289, %286, %287 : vector<4x128xi1>, vector<4x128xf32>
    %291 = arith.addf %285, %290 : vector<4x128xf32>
    %292 = vector.extract_strided_slice %291 {offsets = [0, 0], sizes = [4, 96], strides = [1, 1]} : vector<4x128xf32> to vector<4x96xf32>
    %cst_96 = arith.constant 5.000000e-01 : f32
    %293 = vector.broadcast %cst_96 : f32 to vector<4x96xf32>
    %294 = arith.mulf %293, %292 : vector<4x96xf32>
    %295 = math.tanh %294 : vector<4x96xf32>
    %cst_97 = arith.constant 5.000000e-01 : f32
    %296 = vector.broadcast %cst_97 : f32 to vector<4x96xf32>
    %297 = arith.mulf %296, %295 : vector<4x96xf32>
    %cst_98 = arith.constant 5.000000e-01 : f32
    %298 = vector.broadcast %cst_98 : f32 to vector<4x96xf32>
    %299 = arith.addf %297, %298 : vector<4x96xf32>
    %300 = vector.extract_strided_slice %299 {offsets = [0, 0], sizes = [4, 32], strides = [1, 1]} : vector<4x96xf32> to vector<4x32xf32>
    %301 = vector.extract_strided_slice %299 {offsets = [0, 32], sizes = [4, 32], strides = [1, 1]} : vector<4x96xf32> to vector<4x32xf32>
    %302 = vector.extract_strided_slice %299 {offsets = [0, 64], sizes = [4, 32], strides = [1, 1]} : vector<4x96xf32> to vector<4x32xf32>
    %303 = vector.extract_strided_slice %291 {offsets = [0, 96], sizes = [4, 32], strides = [1, 1]} : vector<4x128xf32> to vector<4x32xf32>
    %304 = math.tanh %303 : vector<4x32xf32>
    %305 = arith.mulf %301, %273 : vector<4x32xf32>
    %306 = arith.mulf %300, %304 : vector<4x32xf32>
    %307 = arith.addf %305, %306 : vector<4x32xf32>
    %308 = math.tanh %307 : vector<4x32xf32>
    %309 = arith.mulf %302, %308 : vector<4x32xf32>
    %310 = vector.extract_strided_slice %309 {offsets = [0, 0], sizes = [1, 32], strides = [1, 1]} : vector<4x32xf32> to vector<1x32xf32>
    %c7_99 = arith.constant 7 : index
    %c0_100 = arith.constant 0 : index
    %311 = vector.load %arg15[%c7_99, %c0_100] : memref<8x128xf32, #tpu.memory_space<vmem>>, vector<1x32xf32>
    tpu.vector_store %arg15[%c7_99, %c0_100], %310 {strides = array<i32>} : memref<8x128xf32, #tpu.memory_space<vmem>>, vector<1x32xf32>,
    %312 = vector.extract_strided_slice %309 {offsets = [2, 0], sizes = [1, 32], strides = [1, 1]} : vector<4x32xf32> to vector<1x32xf32>
    %c0_101 = arith.constant 0 : index
    %c32_102 = arith.constant 32 : index
    %313 = vector.load %arg15[%c0_101, %c32_102] : memref<8x128xf32, #tpu.memory_space<vmem>>, vector<1x32xf32>
    tpu.vector_store %arg15[%c0_101, %c32_102], %312 {strides = array<i32>} : memref<8x128xf32, #tpu.memory_space<vmem>>, vector<1x32xf32>,
    %314 = vector.extract_strided_slice %309 {offsets = [1, 0], sizes = [1, 32], strides = [1, 1]} : vector<4x32xf32> to vector<1x32xf32>
    %c7_103 = arith.constant 7 : index
    %c64_104 = arith.constant 64 : index
    %315 = vector.load %arg15[%c7_103, %c64_104] : memref<8x128xf32, #tpu.memory_space<vmem>>, vector<1x32xf32>
    tpu.vector_store %arg15[%c7_103, %c64_104], %314 {strides = array<i32>} : memref<8x128xf32, #tpu.memory_space<vmem>>, vector<1x32xf32>,
    %316 = vector.extract_strided_slice %309 {offsets = [3, 0], sizes = [1, 32], strides = [1, 1]} : vector<4x32xf32> to vector<1x32xf32>
    %c0_105 = arith.constant 0 : index
    %c96_106 = arith.constant 96 : index
    %317 = vector.load %arg15[%c0_105, %c96_106] : memref<8x128xf32, #tpu.memory_space<vmem>>, vector<1x32xf32>
    tpu.vector_store %arg15[%c0_105, %c96_106], %316 {strides = array<i32>} : memref<8x128xf32, #tpu.memory_space<vmem>>, vector<1x32xf32>,
    %c0_107 = arith.constant 0 : index
    %c0_108 = arith.constant 0 : index
    %318 = vector.load %arg15[%c0_107, %c0_108] : memref<8x128xf32, #tpu.memory_space<vmem>>, vector<8x128xf32>
    %c0_109 = arith.constant 0 : index
    %c0_110 = arith.constant 0 : index
    %319 = vector.load %arg7[%c0_109, %c0_110] : memref<128x64xf32, #tpu.memory_space<vmem>>, vector<128x64xf32>
    %cst_111 = arith.constant dense<0.000000e+00> : vector<8x64xf32>
    %320 = tpu.matmul %318, %319, %cst_111 {dimension_numbers = #tpu.dot_dimension_numbers<[1], [0], [0], [1], [0, 0, 1, 1], [], []>} : vector<8x128xf32>, vector<128x64xf32>, vector<8x64xf32> -> vector<8x64xf32>
    %c0_112 = arith.constant 0 : index
    %c0_113 = arith.constant 0 : index
    %321 = vector.load %arg8[%c0_112, %c0_113] : memref<1x64xf32, #tpu.memory_space<vmem>>, vector<1x64xf32>
    %322 = vector.broadcast %321 : vector<1x64xf32> to vector<8x64xf32>
    %323 = arith.addf %320, %322 : vector<8x64xf32>
    %cst_114 = arith.constant 0.000000e+00 : f32
    %324 = vector.broadcast %cst_114 : f32 to vector<8x64xf32>
    %325 = arith.maximumf %323, %324 : vector<8x64xf32>
    %c0_115 = arith.constant 0 : index
    %c0_116 = arith.constant 0 : index
    %326 = vector.load %arg9[%c0_115, %c0_116] : memref<64x32xf32, #tpu.memory_space<vmem>>, vector<64x32xf32>
    %cst_117 = arith.constant dense<0.000000e+00> : vector<8x32xf32>
    %327 = tpu.matmul %325, %326, %cst_117 {dimension_numbers = #tpu.dot_dimension_numbers<[1], [0], [0], [1], [0, 0, 1, 1], [], []>} : vector<8x64xf32>, vector<64x32xf32>, vector<8x32xf32> -> vector<8x32xf32>
    %c0_118 = arith.constant 0 : index
    %c0_119 = arith.constant 0 : index
    %328 = vector.load %arg10[%c0_118, %c0_119] : memref<1x32xf32, #tpu.memory_space<vmem>>, vector<1x32xf32>
    %329 = vector.broadcast %328 : vector<1x32xf32> to vector<8x32xf32>
    %330 = arith.addf %327, %329 : vector<8x32xf32>
    %cst_120 = arith.constant 0.000000e+00 : f32
    %331 = vector.broadcast %cst_120 : f32 to vector<8x32xf32>
    %332 = arith.maximumf %330, %331 : vector<8x32xf32>
    %333 = vector.extract_strided_slice %332 {offsets = [0, 16], sizes = [8, 16], strides = [1, 1]} : vector<8x32xf32> to vector<8x16xf32>
    %c0_121 = arith.constant 0 : index
    %c0_122 = arith.constant 0 : index
    %334 = vector.load %arg11[%c0_121, %c0_122] : memref<32x32xf32, #tpu.memory_space<vmem>>, vector<32x32xf32>
    %cst_123 = arith.constant dense<0.000000e+00> : vector<8x32xf32>
    %335 = tpu.matmul %332, %334, %cst_123 {dimension_numbers = #tpu.dot_dimension_numbers<[1], [0], [0], [1], [0, 0, 1, 1], [], []>} : vector<8x32xf32>, vector<32x32xf32>, vector<8x32xf32> -> vector<8x32xf32>
    %336 = vector.extract_strided_slice %335 {offsets = [0, 0], sizes = [8, 16], strides = [1, 1]} : vector<8x32xf32> to vector<8x16xf32>
    %337 = arith.mulf %336, %333 : vector<8x16xf32>
    %cst_124 = arith.constant dense<0.000000e+00> : vector<8xf32>
    %338 = vector.multi_reduction <add>, %337, %cst_124 [1] : vector<8x16xf32> to vector<8xf32>
    %339 = vector.shape_cast %338 : vector<8xf32> to vector<8x1xf32>
    %340 = vector.extract_strided_slice %335 {offsets = [0, 16], sizes = [8, 16], strides = [1, 1]} : vector<8x32xf32> to vector<8x16xf32>
    %341 = arith.mulf %340, %333 : vector<8x16xf32>
    %cst_125 = arith.constant dense<0.000000e+00> : vector<8xf32>
    %342 = vector.multi_reduction <add>, %341, %cst_125 [1] : vector<8x16xf32> to vector<8xf32>
    %343 = vector.shape_cast %342 : vector<8xf32> to vector<8x1xf32>
    %c0_126 = arith.constant 0 : index
    %c0_127 = arith.constant 0 : index
    %344 = vector.load %arg12[%c0_126, %c0_127] : memref<32x128xf32, #tpu.memory_space<vmem>>, vector<32x128xf32>
    %cst_128 = arith.constant dense<0.000000e+00> : vector<8x128xf32>
    %345 = tpu.matmul %332, %344, %cst_128 {dimension_numbers = #tpu.dot_dimension_numbers<[1], [0], [0], [1], [0, 0, 1, 1], [], []>} : vector<8x32xf32>, vector<32x128xf32>, vector<8x128xf32> -> vector<8x128xf32>
    %c0_129 = arith.constant 0 : index
    %c0_130 = arith.constant 0 : index
    %346 = vector.load %arg13[%c0_129, %c0_130] : memref<1x128xf32, #tpu.memory_space<vmem>>, vector<1x128xf32>
    %347 = vector.broadcast %346 : vector<1x128xf32> to vector<8x128xf32>
    %348 = arith.addf %345, %347 : vector<8x128xf32>
    %349 = tpu.iota {dimensions = array<i32: 1>} : vector<8x128xi32>
    %c0_i32_131 = arith.constant 0 : i32
    %350 = vector.broadcast %c0_i32_131 : i32 to vector<8x128xi32>
    %351 = arith.cmpi eq, %349, %350 : vector<8x128xi32>
    %cst_132 = arith.constant 0.000000e+00 : f32
    %352 = vector.shape_cast %339 : vector<8x1xf32> to vector<8x1xf32>
    %353 = vector.broadcast %352 : vector<8x1xf32> to vector<8x128xf32>
    %354 = vector.broadcast %cst_132 : f32 to vector<8x128xf32>
    %355 = arith.select %351, %353, %354 : vector<8x128xi1>, vector<8x128xf32>
    %356 = arith.addf %348, %355 : vector<8x128xf32>
    %c1_i32_133 = arith.constant 1 : i32
    %357 = vector.broadcast %c1_i32_133 : i32 to vector<8x128xi32>
    %358 = arith.cmpi eq, %349, %357 : vector<8x128xi32>
    %cst_134 = arith.constant 0.000000e+00 : f32
    %359 = vector.shape_cast %343 : vector<8x1xf32> to vector<8x1xf32>
    %360 = vector.broadcast %359 : vector<8x1xf32> to vector<8x128xf32>
    %361 = vector.broadcast %cst_134 : f32 to vector<8x128xf32>
    %362 = arith.select %358, %360, %361 : vector<8x128xi1>, vector<8x128xf32>
    %363 = arith.addf %356, %362 : vector<8x128xf32>
    %c0_135 = arith.constant 0 : index
    %c0_136 = arith.constant 0 : index
    %364 = vector.load %arg14[%c0_135, %c0_136] : memref<8x128xf32, #tpu.memory_space<vmem>>, vector<8x128xf32>
    tpu.vector_store %arg14[%c0_135, %c0_136], %363 {strides = array<i32>} : memref<8x128xf32, #tpu.memory_space<vmem>>, vector<8x128xf32>,
    return
  }
}

</mosaic_0001>

<llo_original>
// kernel: tpu_custom_call.1
$region0: #{tpu_custom_call.1}
  #allocation0 [shape = 'u32[]', space=smem, size = 0x4, offset = 0x4, fixed_abs, tag = 'smem constant byte address 0x4 - core index']
  #allocation1 [shape = 'u32[144,128]{1,0:T(1,128)}', space=vmem, size = 0x12000, scoped, tag = 'internal scratch']
  #allocation2 [shape = 'f32[8,128]{1,0:T(8,128)}', space=vmem, size = 0x1000, scoped, tag = 'scratch operand']
  %s0 = inlined_call_operand.hbm [shape: f32[16,32], index: 0, kind: input, shape index: {}]
  %s1 = inlined_call_operand.vmem [shape: f32[32,16], index: 1, kind: input, shape index: {}]
  %s2 = inlined_call_operand.vmem [shape: f32[32,32], index: 2, kind: input, shape index: {}]
  %s3 = inlined_call_operand.vmem [shape: f32[64,256], index: 3, kind: input, shape index: {}]
  %s4 = inlined_call_operand.vmem [shape: f32[32,256], index: 4, kind: input, shape index: {}]
  %s5 = inlined_call_operand.vmem [shape: f32[1,128], index: 5, kind: input, shape index: {}]
  %s6 = inlined_call_operand.vmem [shape: f32[1,128], index: 6, kind: input, shape index: {}]
  %s7 = inlined_call_operand.vmem [shape: f32[128,64], index: 7, kind: input, shape index: {}]
  %s8 = inlined_call_operand.vmem [shape: f32[1,64], index: 8, kind: input, shape index: {}]
  %s9 = inlined_call_operand.vmem [shape: f32[64,32], index: 9, kind: input, shape index: {}]
  %s10 = inlined_call_operand.vmem [shape: f32[1,32], index: 10, kind: input, shape index: {}]
  %s11 = inlined_call_operand.vmem [shape: f32[32,32], index: 11, kind: input, shape index: {}]
  %s12 = inlined_call_operand.hbm [shape: f32[32,128], index: 12, kind: input, shape index: {}]
  %s13 = inlined_call_operand.vmem [shape: f32[1,128], index: 13, kind: input, shape index: {}]
  %s14 = inlined_call_operand.hbm [shape: f32[8,128], index: 14, kind: output, shape index: {}]
  %s15 = sld [smem:[#allocation0]]
  $region74: #{tpu_custom_call.1} parent=0
    _
  %s17 = ssub.s32 1, %s15
  %s18 = scalar_select 0, %s17, %s15
  $region1: #{tpu_custom_call.1} parent=0
    #allocation3 [shape = 'u8[8192]{0}', space=vmem, size = 0x2000, scoped, tag = 'input window, operand 0, single buffered']
    #allocation4 [shape = 's32[1]{0}', space=sflag, size = 0x4, scoped, tag = 'scoped memory for tpu_custom_call.1']
    #allocation5 [shape = 's32[1]{0}', space=sflag, size = 0x4, scoped, tag = 'scoped memory for tpu_custom_call.1']
    #allocation6 [shape = 'u8[16384]{0}', space=vmem, size = 0x4000, scoped, tag = 'input window, operand 12, single buffered']
    #allocation7 [shape = 's32[1]{0}', space=sflag, size = 0x4, scoped, tag = 'scoped memory for tpu_custom_call.1']
    #allocation8 [shape = 'u8[4096]{0}', space=vmem, size = 0x1000, scoped, tag = 'output window, operand 0, single buffered']
    %19 = vsyncpa [#allocation4], 0
    %20 = vsyncpa [#allocation7], 0
    %21 = vsyncpa [#allocation5], 0
    // Predicated region
    $region2: #{tpu_custom_call.1} parent=1 // pred_check
      _
    $region3: #{tpu_custom_call.1} parent=1 // pred_check_branch
      %23 = sbr.rel (0) target = $region5
    $region4: #{tpu_custom_call.1} parent=1 // pred_region
      %s25 = ssub.s32 256, 256
      %26 = vsyncadd [#allocation4], %s25
      %s27 = sshll.u32 [#allocation3], 4
      %s28 = int_to_ptr.vmem [resolvable:$true] %s27
      %33 = dma.hbm_to_vmem [thread:$0]  %s0, 256, %s28, [#allocation4], 128, 128, 8
    $region5: #{tpu_custom_call.1} parent=1 // pred_fallthru
      _
    // Predicated region
    $region6: #{tpu_custom_call.1} parent=1 // pred_check
      _
    $region7: #{tpu_custom_call.1} parent=1 // pred_check_branch
      %35 = sbr.rel (0) target = $region9
    $region8: #{tpu_custom_call.1} parent=1 // pred_region
      _
    $region9: #{tpu_custom_call.1} parent=1 // pred_fallthru
      _
    // Predicated region
    $region10: #{tpu_custom_call.1} parent=1 // pred_check
      _
    $region11: #{tpu_custom_call.1} parent=1 // pred_check_branch
      %37 = sbr.rel (0) target = $region13
    $region12: #{tpu_custom_call.1} parent=1 // pred_region
      _
    $region13: #{tpu_custom_call.1} parent=1 // pred_fallthru
      _
    // Predicated region
    $region14: #{tpu_custom_call.1} parent=1 // pred_check
      _
    $region15: #{tpu_custom_call.1} parent=1 // pred_check_branch
      %39 = sbr.rel (0) target = $region17
    $region16: #{tpu_custom_call.1} parent=1 // pred_region
      _
    $region17: #{tpu_custom_call.1} parent=1 // pred_fallthru
      _
    // Predicated region
    $region18: #{tpu_custom_call.1} parent=1 // pred_check
      _
    $region19: #{tpu_custom_call.1} parent=1 // pred_check_branch
      %41 = sbr.rel (0) target = $region21
    $region20: #{tpu_custom_call.1} parent=1 // pred_region
      _
    $region21: #{tpu_custom_call.1} parent=1 // pred_fallthru
      _
    // Predicated region
    $region22: #{tpu_custom_call.1} parent=1 // pred_check
      _
    $region23: #{tpu_custom_call.1} parent=1 // pred_check_branch
      %43 = sbr.rel (0) target = $region25
    $region24: #{tpu_custom_call.1} parent=1 // pred_region
      _
    $region25: #{tpu_custom_call.1} parent=1 // pred_fallthru
      _
    // Predicated region
    $region26: #{tpu_custom_call.1} parent=1 // pred_check
      _
    $region27: #{tpu_custom_call.1} parent=1 // pred_check_branch
      %45 = sbr.rel (0) target = $region29
    $region28: #{tpu_custom_call.1} parent=1 // pred_region
      _
    $region29: #{tpu_custom_call.1} parent=1 // pred_fallthru
      _
    // Predicated region
    $region30: #{tpu_custom_call.1} parent=1 // pred_check
      _
    $region31: #{tpu_custom_call.1} parent=1 // pred_check_branch
      %47 = sbr.rel (0) target = $region33
    $region32: #{tpu_custom_call.1} parent=1 // pred_region
      _
    $region33: #{tpu_custom_call.1} parent=1 // pred_fallthru
      _
    // Predicated region
    $region34: #{tpu_custom_call.1} parent=1 // pred_check
      _
    $region35: #{tpu_custom_call.1} parent=1 // pred_check_branch
      %49 = sbr.rel (0) target = $region37
    $region36: #{tpu_custom_call.1} parent=1 // pred_region
      _
    $region37: #{tpu_custom_call.1} parent=1 // pred_fallthru
      _
    // Predicated region
    $region38: #{tpu_custom_call.1} parent=1 // pred_check
      _
    $region39: #{tpu_custom_call.1} parent=1 // pred_check_branch
      %51 = sbr.rel (0) target = $region41
    $region40: #{tpu_custom_call.1} parent=1 // pred_region
      _
    $region41: #{tpu_custom_call.1} parent=1 // pred_fallthru
      _
    // Predicated region
    $region42: #{tpu_custom_call.1} parent=1 // pred_check
      _
    $region43: #{tpu_custom_call.1} parent=1 // pred_check_branch
      %53 = sbr.rel (0) target = $region45
    $region44: #{tpu_custom_call.1} parent=1 // pred_region
      _
    $region45: #{tpu_custom_call.1} parent=1 // pred_fallthru
      _
    // Predicated region
    $region46: #{tpu_custom_call.1} parent=1 // pred_check
      _
    $region47: #{tpu_custom_call.1} parent=1 // pred_check_branch
      %55 = sbr.rel (0) target = $region49
    $region48: #{tpu_custom_call.1} parent=1 // pred_region
      _
    $region49: #{tpu_custom_call.1} parent=1 // pred_fallthru
      _
    // Predicated region
    $region50: #{tpu_custom_call.1} parent=1 // pred_check
      _
    $region51: #{tpu_custom_call.1} parent=1 // pred_check_branch
      %57 = sbr.rel (0) target = $region53
    $region52: #{tpu_custom_call.1} parent=1 // pred_region
      %s59 = ssub.s32 512, 512
      %60 = vsyncadd [#allocation7], %s59
      %s61 = sshll.u32 [#allocation6], 4
      %s62 = int_to_ptr.vmem [resolvable:$true] %s61
      %67 = dma.hbm_to_vmem [thread:$0]  %s12, 512, %s62, [#allocation7], 128, 128, 8
    $region53: #{tpu_custom_call.1} parent=1 // pred_fallthru
      _
    // Predicated region
    $region54: #{tpu_custom_call.1} parent=1 // pred_check
      _
    $region55: #{tpu_custom_call.1} parent=1 // pred_check_branch
      %69 = sbr.rel (0) target = $region57
    $region56: #{tpu_custom_call.1} parent=1 // pred_region
      _
    $region57: #{tpu_custom_call.1} parent=1 // pred_fallthru
      _
    // Predicated region
    $region58: #{tpu_custom_call.1} parent=1 // pred_check
      _
    $region59: #{tpu_custom_call.1} parent=1 // pred_check_branch
      %71 = sbr.rel (0) target = $region61
    $region60: #{tpu_custom_call.1} parent=1 // pred_region
      %72 = dma.done [#allocation4], 256
    $region61: #{tpu_custom_call.1} parent=1 // pred_fallthru
      _
    // Predicated region
    $region62: #{tpu_custom_call.1} parent=1 // pred_check
      _
    $region63: #{tpu_custom_call.1} parent=1 // pred_check_branch
      %74 = sbr.rel (0) target = $region65
    $region64: #{tpu_custom_call.1} parent=1 // pred_region
      %75 = dma.done [#allocation7], 512
    $region65: #{tpu_custom_call.1} parent=1 // pred_fallthru
      _
    %v76 = vld [vmem:[#allocation3] sm:$0xff]
    %v77 = vld [vmem:[#allocation3 + $0x8] sm:$0xff]
    %v78 = vld [vmem:[%s1] sm:$0xff]
    %v79 = vld [vmem:[%s1 + $0x8] sm:$0xff]
    %v80 = vld [vmem:[%s1 + $0x10] sm:$0xff]
    %v81 = vld [vmem:[%s1 + $0x18] sm:$0xff]
    %vm82 = vcmask 130048
    %v84 = vsel %vm82, %v78, 0
    %v87 = vsel %vm82, %v79, 0
    %v90 = vsel %vm82, %v80, 0
    %v93 = vsel %vm82, %v81, 0
    %95 = vmatprep.subr.mxu0 0.0
    %96 = vmatpush1.msra.mxu0 %v76
    %97 = vmatprep.subr.mxu0 0.0
    %98 = vmatpush1.msra.mxu0 %v77
    %99 = vmatprep.subr.mxu0 0.0
    %100 = vmatpush1.msra.mxu0 0.0
    %101 = vmatprep.subr.mxu0 0.0
    %102 = vmatpush1.msra.mxu0 0.0
    %103 = vmatprep.subr.mxu0 0.0
    %104 = vmatpush1.msra.mxu0 0.0
    %105 = vmatprep.subr.mxu0 0.0
    %106 = vmatpush1.msra.mxu0 0.0
    %107 = vmatprep.subr.mxu0 0.0
    %108 = vmatpush1.msra.mxu0 0.0
    %109 = vmatprep.subr.mxu0 0.0
    %110 = vmatpush1.msra.mxu0 0.0
    %111 = vmatprep.subr.mxu0 0.0
    %112 = vmatpush1.msra.mxu0 0.0
    %113 = vmatprep.subr.mxu0 0.0
    %114 = vmatpush1.msra.mxu0 0.0
    %115 = vmatprep.subr.mxu0 0.0
    %116 = vmatpush1.msra.mxu0 0.0
    %117 = vmatprep.subr.mxu0 0.0
    %118 = vmatpush1.msra.mxu0 0.0
    %119 = vmatprep.subr.mxu0 0.0
    %120 = vmatpush1.msra.mxu0 0.0
    %121 = vmatprep.subr.mxu0 0.0
    %122 = vmatpush1.msra.mxu0 0.0
    %123 = vmatprep.subr.mxu0 0.0
    %124 = vmatpush1.msra.mxu0 0.0
    %125 = vmatprep.subr.mxu0 0.0
    %126 = vmatpush1.msra.mxu0 0.0
    %127 = vmatprep.subr.mxu0 0.0
    %128 = vmatpush1.msra.mxu0 0.0
    %129 = vmatprep.subr.mxu0 0.0
    %130 = vmatpush1.msra.mxu0 0.0
    %131 = vmatprep.subr.mxu0 0.0
    %132 = vmatpush1.msra.mxu0 0.0
    %133 = vmatprep.subr.mxu0 0.0
    %134 = vmatpush1.msra.mxu0 0.0
    %135 = vmatprep.subr.mxu0 0.0
    %136 = vmatpush1.msra.mxu0 0.0
    %137 = vmatprep.subr.mxu0 0.0
    %138 = vmatpush1.msra.mxu0 0.0
    %139 = vmatprep.subr.mxu0 0.0
    %140 = vmatpush1.msra.mxu0 0.0
    %141 = vmatprep.subr.mxu0 0.0
    %142 = vmatpush1.msra.mxu0 0.0
    %143 = vmatprep.subr.mxu0 0.0
    %144 = vmatpush1.msra.mxu0 0.0
    %145 = vmatprep.subr.mxu0 0.0
    %146 = vmatpush1.msra.mxu0 0.0
    %147 = vmatprep.subr.mxu0 0.0
    %148 = vmatpush1.msra.mxu0 0.0
    %149 = vmatprep.subr.mxu0 0.0
    %150 = vmatpush1.msra.mxu0 0.0
    %151 = vmatprep.subr.mxu0 0.0
    %152 = vmatpush1.msra.mxu0 0.0
    %153 = vmatprep.subr.mxu0 0.0
    %154 = vmatpush1.msra.mxu0 0.0
    %155 = vmatprep.subr.mxu0 0.0
    %156 = vmatpush1.msra.mxu0 0.0
    %157 = vmatprep.subr.mxu0 0.0
    %158 = vmatpush1.msra.mxu0 0.0
    %159 = vmatprep.mubr.f32.mxu0 0.0
    %160 = vmatmul.mubr.f32.gmra.mrb[0].mxu0 %v84
    %v161 = vpop.f32.mrb[0].mxu0
    %v162 = vadd.f32 0.0, %v161
    %v163 = vpop.f32.mrb[0].mxu0
    %164 = vmatprep.mubr.f32.mxu0 0.0
    %165 = vmatmul.mubr.f32.gmra.mrb[0].mxu0 %v87
    %v166 = vpop.f32.mrb[0].mxu0
    %v167 = vadd.f32 0.0, %v166
    %v168 = vpop.f32.mrb[0].mxu0
    %169 = vmatprep.mubr.f32.mxu0 0.0
    %170 = vmatmul.mubr.f32.gmra.mrb[0].mxu0 %v90
    %v171 = vpop.f32.mrb[0].mxu0
    %v172 = vadd.f32 0.0, %v171
    %v173 = vpop.f32.mrb[0].mxu0
    %174 = vmatprep.mubr.f32.mxu0 0.0
    %175 = vmatmul.mubr.f32.gmra.mrb[0].mxu0 %v93
    %v176 = vpop.f32.mrb[0].mxu0
    %v177 = vadd.f32 0.0, %v176
    %v178 = vpop.f32.mrb[0].mxu0
    %179 = vdwg.mxu0
    %v180 = vld [vmem:[%s3] sm:$0xff]
    %v181 = vld [vmem:[%s3 + $0x8] sm:$0xff]
    %v182 = vld [vmem:[%s3 + $0x10] sm:$0xff]
    %v183 = vld [vmem:[%s3 + $0x18] sm:$0xff]
    %v184 = vld [vmem:[%s3 + $0x20] sm:$0xff]
    %v185 = vld [vmem:[%s3 + $0x28] sm:$0xff]
    %v186 = vld [vmem:[%s3 + $0x30] sm:$0xff]
    %v187 = vld [vmem:[%s3 + $0x38] sm:$0xff]
    %v188 = vld [vmem:[%s3 + $0x40] sm:$0xff]
    %v189 = vld [vmem:[%s3 + $0x48] sm:$0xff]
    %v190 = vld [vmem:[%s3 + $0x50] sm:$0xff]
    %v191 = vld [vmem:[%s3 + $0x58] sm:$0xff]
    %v192 = vld [vmem:[%s3 + $0x60] sm:$0xff]
    %v193 = vld [vmem:[%s3 + $0x68] sm:$0xff]
    %v194 = vld [vmem:[%s3 + $0x70] sm:$0xff]
    %v195 = vld [vmem:[%s3 + $0x78] sm:$0xff]
    %v196 = vld [vmem:[%s2] sm:$0xff]
    %v197 = vld [vmem:[%s2 + $0x8] sm:$0xff]
    %v198 = vld [vmem:[%s2 + $0x10] sm:$0xff]
    %v199 = vld [vmem:[%s2 + $0x18] sm:$0xff]
    %vm200 = vcmask 261120
    %v202 = vsel %vm200, %v196, 0
    %v205 = vsel %vm200, %v197, 0
    %v208 = vsel %vm200, %v198, 0
    %v211 = vsel %vm200, %v199, 0
    %213 = vmatprep.subr.mxu0 %v189
    %214 = vmatpush1.msra.mxu0 %v188
    %215 = vmatprep.subr.mxu0 %v191
    %216 = vmatpush1.msra.mxu0 %v190
    %217 = vmatprep.subr.mxu0 %v193
    %218 = vmatpush1.msra.mxu0 %v192
    %219 = vmatprep.subr.mxu0 %v195
    %220 = vmatpush1.msra.mxu0 %v194
    %221 = vmatprep.subr.mxu0 0.0
    %222 = vmatpush1.msra.mxu0 0.0
    %223 = vmatprep.subr.mxu0 0.0
    %224 = vmatpush1.msra.mxu0 0.0
    %225 = vmatprep.subr.mxu0 0.0
    %226 = vmatpush1.msra.mxu0 0.0
    %227 = vmatprep.subr.mxu0 0.0
    %228 = vmatpush1.msra.mxu0 0.0
    %229 = vmatprep.subr.mxu0 0.0
    %230 = vmatpush1.msra.mxu0 0.0
    %231 = vmatprep.subr.mxu0 0.0
    %232 = vmatpush1.msra.mxu0 0.0
    %233 = vmatprep.subr.mxu0 0.0
    %234 = vmatpush1.msra.mxu0 0.0
    %235 = vmatprep.subr.mxu0 0.0
    %236 = vmatpush1.msra.mxu0 0.0
    %237 = vmatprep.subr.mxu0 0.0
    %238 = vmatpush1.msra.mxu0 0.0
    %239 = vmatprep.subr.mxu0 0.0
    %240 = vmatpush1.msra.mxu0 0.0
    %241 = vmatprep.subr.mxu0 0.0
    %242 = vmatpush1.msra.mxu0 0.0
    %243 = vmatprep.subr.mxu0 0.0
    %244 = vmatpush1.msra.mxu0 0.0
    %245 = vmatprep.subr.mxu0 0.0
    %246 = vmatpush1.msra.mxu0 0.0
    %247 = vmatprep.subr.mxu0 0.0
    %248 = vmatpush1.msra.mxu0 0.0
    %249 = vmatprep.subr.mxu0 0.0
    %250 = vmatpush1.msra.mxu0 0.0
    %251 = vmatprep.subr.mxu0 0.0
    %252 = vmatpush1.msra.mxu0 0.0
    %253 = vmatprep.subr.mxu0 0.0
    %254 = vmatpush1.msra.mxu0 0.0
    %255 = vmatprep.subr.mxu0 0.0
    %256 = vmatpush1.msra.mxu0 0.0
    %257 = vmatprep.subr.mxu0 0.0
    %258 = vmatpush1.msra.mxu0 0.0
    %259 = vmatprep.subr.mxu0 0.0
    %260 = vmatpush1.msra.mxu0 0.0
    %261 = vmatprep.subr.mxu0 0.0
    %262 = vmatpush1.msra.mxu0 0.0
    %263 = vmatprep.subr.mxu0 0.0
    %264 = vmatpush1.msra.mxu0 0.0
    %265 = vmatprep.subr.mxu0 0.0
    %266 = vmatpush1.msra.mxu0 0.0
    %267 = vmatprep.subr.mxu0 0.0
    %268 = vmatpush1.msra.mxu0 0.0
    %269 = vmatprep.subr.mxu0 0.0
    %270 = vmatpush1.msra.mxu0 0.0
    %271 = vmatprep.subr.mxu0 0.0
    %272 = vmatpush1.msra.mxu0 0.0
    %273 = vmatprep.subr.mxu0 0.0
    %274 = vmatpush1.msra.mxu0 0.0
    %275 = vmatprep.subr.mxu0 0.0
    %276 = vmatpush1.msra.mxu0 0.0
    %277 = vmatprep.mubr.f32.mxu0 0.0
    %278 = vmatmul.mubr.f32.gmra.mrb[0].mxu0 %v202
    %v279 = vpop.f32.mrb[0].mxu0
    %v280 = vadd.f32 0.0, %v279
    %v281 = vpop.f32.mrb[0].mxu0
    %v282 = vadd.f32 0.0, %v281
    %283 = vmatprep.mubr.f32.mxu0 0.0
    %284 = vmatmul.mubr.f32.gmra.mrb[0].mxu0 %v205
    %v285 = vpop.f32.mrb[0].mxu0
    %v286 = vadd.f32 0.0, %v285
    %v287 = vpop.f32.mrb[0].mxu0
    %v288 = vadd.f32 0.0, %v287
    %289 = vmatprep.mubr.f32.mxu0 0.0
    %290 = vmatmul.mubr.f32.gmra.mrb[0].mxu0 %v208
    %v291 = vpop.f32.mrb[0].mxu0
    %v292 = vadd.f32 0.0, %v291
    %v293 = vpop.f32.mrb[0].mxu0
    %v294 = vadd.f32 0.0, %v293
    %295 = vmatprep.mubr.f32.mxu0 0.0
    %296 = vmatmul.mubr.f32.gmra.mrb[0].mxu0 %v211
    %v297 = vpop.f32.mrb[0].mxu0
    %v298 = vadd.f32 0.0, %v297
    %v299 = vpop.f32.mrb[0].mxu0
    %v300 = vadd.f32 0.0, %v299
    %301 = vdwg.mxu0
    %v303 = vsel %vm200, %v162, 0
    %v306 = vsel %vm200, %v167, 0
    %v309 = vsel %vm200, %v172, 0
    %v312 = vsel %vm200, %v177, 0
    %314 = vmatprep.subr.mxu0 %v181
    %315 = vmatpush1.msra.mxu0 %v180
    %316 = vmatprep.subr.mxu0 %v183
    %317 = vmatpush1.msra.mxu0 %v182
    %318 = vmatprep.subr.mxu0 %v185
    %319 = vmatpush1.msra.mxu0 %v184
    %320 = vmatprep.subr.mxu0 %v187
    %321 = vmatpush1.msra.mxu0 %v186
    %322 = vmatprep.subr.mxu0 0.0
    %323 = vmatpush1.msra.mxu0 0.0
    %324 = vmatprep.subr.mxu0 0.0
    %325 = vmatpush1.msra.mxu0 0.0
    %326 = vmatprep.subr.mxu0 0.0
    %327 = vmatpush1.msra.mxu0 0.0
    %328 = vmatprep.subr.mxu0 0.0
    %329 = vmatpush1.msra.mxu0 0.0
    %330 = vmatprep.subr.mxu0 0.0
    %331 = vmatpush1.msra.mxu0 0.0
    %332 = vmatprep.subr.mxu0 0.0
    %333 = vmatpush1.msra.mxu0 0.0
    %334 = vmatprep.subr.mxu0 0.0
    %335 = vmatpush1.msra.mxu0 0.0
    %336 = vmatprep.subr.mxu0 0.0
    %337 = vmatpush1.msra.mxu0 0.0
    %338 = vmatprep.subr.mxu0 0.0
    %339 = vmatpush1.msra.mxu0 0.0
    %340 = vmatprep.subr.mxu0 0.0
    %341 = vmatpush1.msra.mxu0 0.0
    %342 = vmatprep.subr.mxu0 0.0
    %343 = vmatpush1.msra.mxu0 0.0
    %344 = vmatprep.subr.mxu0 0.0
    %345 = vmatpush1.msra.mxu0 0.0
    %346 = vmatprep.subr.mxu0 0.0
    %347 = vmatpush1.msra.mxu0 0.0
    %348 = vmatprep.subr.mxu0 0.0
    %349 = vmatpush1.msra.mxu0 0.0
    %350 = vmatprep.subr.mxu0 0.0
    %351 = vmatpush1.msra.mxu0 0.0
    %352 = vmatprep.subr.mxu0 0.0
    %353 = vmatpush1.msra.mxu0 0.0
    %354 = vmatprep.subr.mxu0 0.0
    %355 = vmatpush1.msra.mxu0 0.0
    %356 = vmatprep.subr.mxu0 0.0
    %357 = vmatpush1.msra.mxu0 0.0
    %358 = vmatprep.subr.mxu0 0.0
    %359 = vmatpush1.msra.mxu0 0.0
    %360 = vmatprep.subr.mxu0 0.0
    %361 = vmatpush1.msra.mxu0 0.0
    %362 = vmatprep.subr.mxu0 0.0
    %363 = vmatpush1.msra.mxu0 0.0
    %364 = vmatprep.subr.mxu0 0.0
    %365 = vmatpush1.msra.mxu0 0.0
    %366 = vmatprep.subr.mxu0 0.0
    %367 = vmatpush1.msra.mxu0 0.0
    %368 = vmatprep.subr.mxu0 0.0
    %369 = vmatpush1.msra.mxu0 0.0
    %370 = vmatprep.subr.mxu0 0.0
    %371 = vmatpush1.msra.mxu0 0.0
    %372 = vmatprep.subr.mxu0 0.0
    %373 = vmatpush1.msra.mxu0 0.0
    %374 = vmatprep.subr.mxu0 0.0
    %375 = vmatpush1.msra.mxu0 0.0
    %376 = vmatprep.subr.mxu0 0.0
    %377 = vmatpush1.msra.mxu0 0.0
    %378 = vmatprep.mubr.f32.mxu0 0.0
    %379 = vmatmul.mubr.f32.gmra.mrb[0].mxu0 %v303
    %v380 = vpop.f32.mrb[0].mxu0
    %v381 = vadd.f32 %v280, %v380
    %v382 = vpop.f32.mrb[0].mxu0
    %v383 = vadd.f32 %v282, %v382
    %384 = vmatprep.mubr.f32.mxu0 0.0
    %385 = vmatmul.mubr.f32.gmra.mrb[0].mxu0 %v306
    %v386 = vpop.f32.mrb[0].mxu0
    %v387 = vadd.f32 %v286, %v386
    %v388 = vpop.f32.mrb[0].mxu0
    %v389 = vadd.f32 %v288, %v388
    %390 = vmatprep.mubr.f32.mxu0 0.0
    %391 = vmatmul.mubr.f32.gmra.mrb[0].mxu0 %v309
    %v392 = vpop.f32.mrb[0].mxu0
    %v393 = vadd.f32 %v292, %v392
    %v394 = vpop.f32.mrb[0].mxu0
    %v395 = vadd.f32 %v294, %v394
    %396 = vmatprep.mubr.f32.mxu0 0.0
    %397 = vmatmul.mubr.f32.gmra.mrb[0].mxu0 %v312
    %v398 = vpop.f32.mrb[0].mxu0
    %v399 = vadd.f32 %v298, %v398
    %v400 = vpop.f32.mrb[0].mxu0
    %v401 = vadd.f32 %v300, %v400
    %402 = vdwg.mxu0
    %v403 = vlaneseq
    %v404 = vshrl.u32 %v403, 7
    %v405 = vadd.s32 %v404, 8
    %v406 = vadd.s32 %v404, 16
    %v407 = vadd.s32 %v404, 24
    %vm408 = vcmp.lt.s32.totalorder %v404, 0
    %v409 = vsub.s32 0, %v404
    %v410 = vsel %vm408, %v409, %v404
    %v411 = vshrl.u32 %v410, 2
    %v412 = vand.u32 %v410, 3
    %v413 = vsub.s32 0, %v412
    %v414 = vsel %vm408, %v413, %v412
    %vm415 = vcmp.lt.s32.totalorder %v405, 0
    %v416 = vsub.s32 0, %v405
    %v417 = vsel %vm415, %v416, %v405
    %v418 = vshrl.u32 %v417, 2
    %v419 = vand.u32 %v417, 3
    %v420 = vsub.s32 0, %v419
    %v421 = vsel %vm415, %v420, %v419
    %vm422 = vcmp.lt.s32.totalorder %v406, 0
    %v423 = vsub.s32 0, %v406
    %v424 = vsel %vm422, %v423, %v406
    %v425 = vshrl.u32 %v424, 2
    %v426 = vand.u32 %v424, 3
    %v427 = vsub.s32 0, %v426
    %v428 = vsel %vm422, %v427, %v426
    %vm429 = vcmp.lt.s32.totalorder %v407, 0
    %v430 = vsub.s32 0, %v407
    %v431 = vsel %vm429, %v430, %v407
    %v432 = vshrl.u32 %v431, 2
    %v433 = vand.u32 %v431, 3
    %v434 = vsub.s32 0, %v433
    %v435 = vsel %vm429, %v434, %v433
    %vm436 = vcmp.ne.s32.totalorder %v414, 0
    %vm437 = vcmp.ne.s32.totalorder %v421, 0
    %vm438 = vcmp.ne.s32.totalorder %v428, 0
    %vm439 = vcmp.ne.s32.totalorder %v435, 0
    %vm440 = vcmp.lt.s32.totalorder %v414, 0
    %vm441 = vcmp.lt.s32.totalorder %v421, 0
    %vm442 = vcmp.lt.s32.totalorder %v428, 0
    %vm443 = vcmp.lt.s32.totalorder %v435, 0
    %vm444 = vmand %vm440, %vm436
    %vm445 = vmand %vm441, %vm437
    %vm446 = vmand %vm442, %vm438
    %vm447 = vmand %vm443, %vm439
    %v448 = vadd.s32 %v414, 4
    %v449 = vadd.s32 %v421, 4
    %v450 = vadd.s32 %v428, 4
    %v451 = vadd.s32 %v435, 4
    %v452 = vsel %vm444, %v448, %v414
    %v453 = vsel %vm445, %v449, %v421
    %v454 = vsel %vm446, %v450, %v428
    %v455 = vsel %vm447, %v451, %v435
    %vm456 = vcmp.ge.s32.totalorder %v452, 2
    %vm457 = vcmp.ge.s32.totalorder %v453, 2
    %vm458 = vcmp.ge.s32.totalorder %v454, 2
    %vm459 = vcmp.ge.s32.totalorder %v455, 2
    %v460 = vld [vmem:[%s6] sm:$0x1]
    %v462 = vlaneseq
    %v463 = vshrl.u32 %v462, 7
    %v464 = vsub.s32 0, %v463
    %v465 = vrot.slane %v460, %v464
    %v467 = vadd.f32 %v383, %v465
    %v468 = vadd.f32 %v389, %v465
    %v469 = vadd.f32 %v395, %v465
    %v470 = vadd.f32 %v401, %v465
    %v471 = vld [vmem:[%s5] sm:$0x1]
    %v473 = vlaneseq
    %v474 = vshrl.u32 %v473, 7
    %v475 = vsub.s32 0, %v474
    %v476 = vrot.slane %v471, %v475
    %v478 = vadd.f32 %v381, %v476
    %v479 = vadd.f32 %v387, %v476
    %v480 = vadd.f32 %v393, %v476
    %v481 = vadd.f32 %v399, %v476
    %v482 = vsel %vm456, 1, 0
    %v483 = vsel %vm457, 1, 0
    %v484 = vsel %vm458, 1, 0
    %v485 = vsel %vm459, 1, 0
    %vm486 = vcmp.eq.s32.totalorder %v482, 1
    %vm487 = vcmp.eq.s32.totalorder %v483, 1
    %vm488 = vcmp.eq.s32.totalorder %v484, 1
    %vm489 = vcmp.eq.s32.totalorder %v485, 1
    %v490 = vsel %vm486, %v467, %v478
    %v491 = vsel %vm487, %v468, %v479
    %v492 = vsel %vm488, %v469, %v480
    %v493 = vsel %vm489, %v470, %v481
    %v494 = vld [vmem:[%s4] sm:$0xff]
    %v495 = vld [vmem:[%s4 + $0x8] sm:$0xff]
    %v496 = vld [vmem:[%s4 + $0x10] sm:$0xff]
    %v497 = vld [vmem:[%s4 + $0x18] sm:$0xff]
    %v498 = vld [vmem:[%s4 + $0x20] sm:$0xff]
    %v499 = vld [vmem:[%s4 + $0x28] sm:$0xff]
    %v500 = vld [vmem:[%s4 + $0x30] sm:$0xff]
    %v501 = vld [vmem:[%s4 + $0x38] sm:$0xff]
    %vm502 = vcmp.ge.s32.totalorder %v404, 2
    %v504 = vsel %vm200, 0.0, 0
    %506 = vmatprep.subr.mxu0 %v495
    %507 = vmatpush1.msra.mxu0 %v494
    %508 = vmatprep.subr.mxu0 %v497
    %509 = vmatpush1.msra.mxu0 %v496
    %510 = vmatprep.subr.mxu0 %v499
    %511 = vmatpush1.msra.mxu0 %v498
    %512 = vmatprep.subr.mxu0 %v501
    %513 = vmatpush1.msra.mxu0 %v500
    %514 = vmatprep.subr.mxu0 0.0
    %515 = vmatpush1.msra.mxu0 0.0
    %516 = vmatprep.subr.mxu0 0.0
    %517 = vmatpush1.msra.mxu0 0.0
    %518 = vmatprep.subr.mxu0 0.0
    %519 = vmatpush1.msra.mxu0 0.0
    %520 = vmatprep.subr.mxu0 0.0
    %521 = vmatpush1.msra.mxu0 0.0
    %522 = vmatprep.subr.mxu0 0.0
    %523 = vmatpush1.msra.mxu0 0.0
    %524 = vmatprep.subr.mxu0 0.0
    %525 = vmatpush1.msra.mxu0 0.0
    %526 = vmatprep.subr.mxu0 0.0
    %527 = vmatpush1.msra.mxu0 0.0
    %528 = vmatprep.subr.mxu0 0.0
    %529 = vmatpush1.msra.mxu0 0.0
    %530 = vmatprep.subr.mxu0 0.0
    %531 = vmatpush1.msra.mxu0 0.0
    %532 = vmatprep.subr.mxu0 0.0
    %533 = vmatpush1.msra.mxu0 0.0
    %534 = vmatprep.subr.mxu0 0.0
    %535 = vmatpush1.msra.mxu0 0.0
    %536 = vmatprep.subr.mxu0 0.0
    %537 = vmatpush1.msra.mxu0 0.0
    %538 = vmatprep.subr.mxu0 0.0
    %539 = vmatpush1.msra.mxu0 0.0
    %540 = vmatprep.subr.mxu0 0.0
    %541 = vmatpush1.msra.mxu0 0.0
    %542 = vmatprep.subr.mxu0 0.0
    %543 = vmatpush1.msra.mxu0 0.0
    %544 = vmatprep.subr.mxu0 0.0
    %545 = vmatpush1.msra.mxu0 0.0
    %546 = vmatprep.subr.mxu0 0.0
    %547 = vmatpush1.msra.mxu0 0.0
    %548 = vmatprep.subr.mxu0 0.0
    %549 = vmatpush1.msra.mxu0 0.0
    %550 = vmatprep.subr.mxu0 0.0
    %551 = vmatpush1.msra.mxu0 0.0
    %552 = vmatprep.subr.mxu0 0.0
    %553 = vmatpush1.msra.mxu0 0.0
    %554 = vmatprep.subr.mxu0 0.0
    %555 = vmatpush1.msra.mxu0 0.0
    %556 = vmatprep.subr.mxu0 0.0
    %557 = vmatpush1.msra.mxu0 0.0
    %558 = vmatprep.subr.mxu0 0.0
    %559 = vmatpush1.msra.mxu0 0.0
    %560 = vmatprep.subr.mxu0 0.0
    %561 = vmatpush1.msra.mxu0 0.0
    %562 = vmatprep.subr.mxu0 0.0
    %563 = vmatpush1.msra.mxu0 0.0
    %564 = vmatprep.subr.mxu0 0.0
    %565 = vmatpush1.msra.mxu0 0.0
    %566 = vmatprep.subr.mxu0 0.0
    %567 = vmatpush1.msra.mxu0 0.0
    %568 = vmatprep.subr.mxu0 0.0
    %569 = vmatpush1.msra.mxu0 0.0
    %570 = vmatprep.mubr.f32.mxu0 0.0
    %571 = vmatmul.mubr.f32.gmra.mrb[0].mxu0 %v504
    %v572 = vpop.f32.mrb[0].mxu0
    %v573 = vadd.f32 0.0, %v572
    %v574 = vpop.f32.mrb[0].mxu0
    %v575 = vadd.f32 0.0, %v574
    %576 = vdwg.mxu0
    %v577 = vsel %vm502, 1, 0
    %vm578 = vcmp.eq.s32.totalorder %v577, 1
    %v579 = vsel %vm578, %v575, %v573
    %v580 = vadd.f32 %v490, %v579
    %v581 = vmul.f32 %v580, 0.5
    %v582 = vtanh.pop %v581
    %v583 = vmul.f32 %v582, 0.5
    %v584 = vadd.f32 %v583, 0.5
    %v585 = vtanh.pop %v580
    %v586 = vmul.f32 %v584, 0.0
    %588 = vrot.lane.b32.xlu0 %v585, 32
    %v589 = vpop.permute.xlu0 %588
    %v591 = vmul.f32 %v584, %v589
    %593 = vrot.lane.b32.xlu0 %v591, 32
    %v594 = vpop.permute.xlu0 %593
    %v596 = vadd.f32 %v586, %v594
    %v597 = vtanh.pop %v596
    %599 = vrot.lane.b32.xlu0 %v597, 32
    %v600 = vpop.permute.xlu0 %599
    %v602 = vmul.f32 %v584, %v600
    %604 = vrot.lane.b32.xlu0 %v602, 64
    %v605 = vpop.permute.xlu0 %604
    %vm607 = vcmask 253952
    %608 = vst.msk [vmem:[#allocation2] sm:$0x1] %vm607, %v605
    %609 = vrot.lane.b32.xlu0 %v602, 96
    %v610 = vpop.permute.xlu0 %609
    %vm612 = vcmask 518402
    %613 = vst.msk [vmem:[#allocation2 + $0x5] sm:$0x4] %vm612, %v610
    %vm614 = vcmask 779777
    %615 = vst.msk [vmem:[#allocation2 - $0x1] sm:$0x2] %vm614, %v602
    %616 = vrot.lane.b32.xlu0 %v602, 32
    %v617 = vpop.permute.xlu0 %616
    %vm619 = vcmask 1044227
    %620 = vst.msk [vmem:[#allocation2 + $0x4] sm:$0x8] %vm619, %v617
    %v621 = vsel %vm200, %v605, 0
    %623 = vmatprep.subr.mxu0 %v495
    %624 = vmatpush1.msra.mxu0 %v494
    %625 = vmatprep.subr.mxu0 %v497
    %626 = vmatpush1.msra.mxu0 %v496
    %627 = vmatprep.subr.mxu0 %v499
    %628 = vmatpush1.msra.mxu0 %v498
    %629 = vmatprep.subr.mxu0 %v501
    %630 = vmatpush1.msra.mxu0 %v500
    %631 = vmatprep.subr.mxu0 0.0
    %632 = vmatpush1.msra.mxu0 0.0
    %633 = vmatprep.subr.mxu0 0.0
    %634 = vmatpush1.msra.mxu0 0.0
    %635 = vmatprep.subr.mxu0 0.0
    %636 = vmatpush1.msra.mxu0 0.0
    %637 = vmatprep.subr.mxu0 0.0
    %638 = vmatpush1.msra.mxu0 0.0
    %639 = vmatprep.subr.mxu0 0.0
    %640 = vmatpush1.msra.mxu0 0.0
    %641 = vmatprep.subr.mxu0 0.0
    %642 = vmatpush1.msra.mxu0 0.0
    %643 = vmatprep.subr.mxu0 0.0
    %644 = vmatpush1.msra.mxu0 0.0
    %645 = vmatprep.subr.mxu0 0.0
    %646 = vmatpush1.msra.mxu0 0.0
    %647 = vmatprep.subr.mxu0 0.0
    %648 = vmatpush1.msra.mxu0 0.0
    %649 = vmatprep.subr.mxu0 0.0
    %650 = vmatpush1.msra.mxu0 0.0
    %651 = vmatprep.subr.mxu0 0.0
    %652 = vmatpush1.msra.mxu0 0.0
    %653 = vmatprep.subr.mxu0 0.0
    %654 = vmatpush1.msra.mxu0 0.0
    %655 = vmatprep.subr.mxu0 0.0
    %656 = vmatpush1.msra.mxu0 0.0
    %657 = vmatprep.subr.mxu0 0.0
    %658 = vmatpush1.msra.mxu0 0.0
    %659 = vmatprep.subr.mxu0 0.0
    %660 = vmatpush1.msra.mxu0 0.0
    %661 = vmatprep.subr.mxu0 0.0
    %662 = vmatpush1.msra.mxu0 0.0
    %663 = vmatprep.subr.mxu0 0.0
    %664 = vmatpush1.msra.mxu0 0.0
    %665 = vmatprep.subr.mxu0 0.0
    %666 = vmatpush1.msra.mxu0 0.0
    %667 = vmatprep.subr.mxu0 0.0
    %668 = vmatpush1.msra.mxu0 0.0
    %669 = vmatprep.subr.mxu0 0.0
    %670 = vmatpush1.msra.mxu0 0.0
    %671 = vmatprep.subr.mxu0 0.0
    %672 = vmatpush1.msra.mxu0 0.0
    %673 = vmatprep.subr.mxu0 0.0
    %674 = vmatpush1.msra.mxu0 0.0
    %675 = vmatprep.subr.mxu0 0.0
    %676 = vmatpush1.msra.mxu0 0.0
    %677 = vmatprep.subr.mxu0 0.0
    %678 = vmatpush1.msra.mxu0 0.0
    %679 = vmatprep.subr.mxu0 0.0
    %680 = vmatpush1.msra.mxu0 0.0
    %681 = vmatprep.subr.mxu0 0.0
    %682 = vmatpush1.msra.mxu0 0.0
    %683 = vmatprep.subr.mxu0 0.0
    %684 = vmatpush1.msra.mxu0 0.0
    %685 = vmatprep.subr.mxu0 0.0
    %686 = vmatpush1.msra.mxu0 0.0
    %687 = vmatprep.mubr.f32.mxu0 0.0
    %688 = vmatmul.mubr.f32.gmra.mrb[0].mxu0 %v621
    %v689 = vpop.f32.mrb[0].mxu0
    %v690 = vadd.f32 0.0, %v689
    %v691 = vpop.f32.mrb[0].mxu0
    %v692 = vadd.f32 0.0, %v691
    %693 = vdwg.mxu0
    %v694 = vsel %vm578, %v692, %v690
    %v696 = vrot.slane %v694, 4
    %v698 = vadd.f32 %v490, %v696
    %v699 = vmul.f32 %v698, 0.5
    %v700 = vtanh.pop %v699
    %v701 = vmul.f32 %v700, 0.5
    %v702 = vadd.f32 %v701, 0.5
    %v703 = vtanh.pop %v698
    %v705 = vrot.slane %v596, 4
    %v707 = vmul.f32 %v702, %v705
    %709 = vrot.lane.b32.xlu0 %v703, 32
    %v710 = vpop.permute.xlu0 %709
    %v712 = vmul.f32 %v702, %v710
    %714 = vrot.lane.b32.xlu0 %v712, 32
    %v715 = vpop.permute.xlu0 %714
    %v717 = vadd.f32 %v707, %v715
    %v718 = vtanh.pop %v717
    %720 = vrot.lane.b32.xlu0 %v718, 32
    %v721 = vpop.permute.xlu0 %720
    %v723 = vmul.f32 %v702, %v721
    %725 = vrot.lane.b32.xlu0 %v723, 64
    %v726 = vpop.permute.xlu0 %725
    %vm728 = vcmask 258052
    %729 = vst.msk [vmem:[#allocation2 - $0x3] sm:$0x10] %vm728, %v726
    %730 = vrot.lane.b32.xlu0 %v723, 96
    %v731 = vpop.permute.xlu0 %730
    %vm733 = vcmask 522502
    %734 = vst.msk [vmem:[#allocation2] sm:$0x40] %vm733, %v731
    %vm735 = vcmask 783877
    %736 = vst.msk [vmem:[#allocation2 - $0x4] sm:$0x20] %vm735, %v723
    %737 = vrot.lane.b32.xlu0 %v723, 32
    %v738 = vpop.permute.xlu0 %737
    %vm740 = vcmask 1048327
    %741 = vst.msk [vmem:[#allocation2 - $0x1] sm:$0x80] %vm740, %v738
    %v742 = vrot.slane %v723, 4
    %743 = vrot.lane.b32.xlu0 %v742, 64
    %v744 = vpop.permute.xlu0 %743
    %v745 = vsel %vm200, %v744, 0
    %747 = vmatprep.subr.mxu0 %v495
    %748 = vmatpush1.msra.mxu0 %v494
    %749 = vmatprep.subr.mxu0 %v497
    %750 = vmatpush1.msra.mxu0 %v496
    %751 = vmatprep.subr.mxu0 %v499
    %752 = vmatpush1.msra.mxu0 %v498
    %753 = vmatprep.subr.mxu0 %v501
    %754 = vmatpush1.msra.mxu0 %v500
    %755 = vmatprep.subr.mxu0 0.0
    %756 = vmatpush1.msra.mxu0 0.0
    %757 = vmatprep.subr.mxu0 0.0
    %758 = vmatpush1.msra.mxu0 0.0
    %759 = vmatprep.subr.mxu0 0.0
    %760 = vmatpush1.msra.mxu0 0.0
    %761 = vmatprep.subr.mxu0 0.0
    %762 = vmatpush1.msra.mxu0 0.0
    %763 = vmatprep.subr.mxu0 0.0
    %764 = vmatpush1.msra.mxu0 0.0
    %765 = vmatprep.subr.mxu0 0.0
    %766 = vmatpush1.msra.mxu0 0.0
    %767 = vmatprep.subr.mxu0 0.0
    %768 = vmatpush1.msra.mxu0 0.0
    %769 = vmatprep.subr.mxu0 0.0
    %770 = vmatpush1.msra.mxu0 0.0
    %771 = vmatprep.subr.mxu0 0.0
    %772 = vmatpush1.msra.mxu0 0.0
    %773 = vmatprep.subr.mxu0 0.0
    %774 = vmatpush1.msra.mxu0 0.0
    %775 = vmatprep.subr.mxu0 0.0
    %776 = vmatpush1.msra.mxu0 0.0
    %777 = vmatprep.subr.mxu0 0.0
    %778 = vmatpush1.msra.mxu0 0.0
    %779 = vmatprep.subr.mxu0 0.0
    %780 = vmatpush1.msra.mxu0 0.0
    %781 = vmatprep.subr.mxu0 0.0
    %782 = vmatpush1.msra.mxu0 0.0
    %783 = vmatprep.subr.mxu0 0.0
    %784 = vmatpush1.msra.mxu0 0.0
    %785 = vmatprep.subr.mxu0 0.0
    %786 = vmatpush1.msra.mxu0 0.0
    %787 = vmatprep.subr.mxu0 0.0
    %788 = vmatpush1.msra.mxu0 0.0
    %789 = vmatprep.subr.mxu0 0.0
    %790 = vmatpush1.msra.mxu0 0.0
    %791 = vmatprep.subr.mxu0 0.0
    %792 = vmatpush1.msra.mxu0 0.0
    %793 = vmatprep.subr.mxu0 0.0
    %794 = vmatpush1.msra.mxu0 0.0
    %795 = vmatprep.subr.mxu0 0.0
    %796 = vmatpush1.msra.mxu0 0.0
    %797 = vmatprep.subr.mxu0 0.0
    %798 = vmatpush1.msra.mxu0 0.0
    %799 = vmatprep.subr.mxu0 0.0
    %800 = vmatpush1.msra.mxu0 0.0
    %801 = vmatprep.subr.mxu0 0.0
    %802 = vmatpush1.msra.mxu0 0.0
    %803 = vmatprep.subr.mxu0 0.0
    %804 = vmatpush1.msra.mxu0 0.0
    %805 = vmatprep.subr.mxu0 0.0
    %806 = vmatpush1.msra.mxu0 0.0
    %807 = vmatprep.subr.mxu0 0.0
    %808 = vmatpush1.msra.mxu0 0.0
    %809 = vmatprep.subr.mxu0 0.0
    %810 = vmatpush1.msra.mxu0 0.0
    %811 = vmatprep.mubr.f32.mxu0 0.0
    %812 = vmatmul.mubr.f32.gmra.mrb[0].mxu0 %v745
    %v813 = vpop.f32.mrb[0].mxu0
    %v814 = vadd.f32 0.0, %v813
    %v815 = vpop.f32.mrb[0].mxu0
    %v816 = vadd.f32 0.0, %v815
    %817 = vdwg.mxu0
    %v818 = vsel %vm578, %v816, %v814
    %v819 = vadd.f32 %v491, %v818
    %v820 = vmul.f32 %v819, 0.5
    %v821 = vtanh.pop %v820
    %v822 = vmul.f32 %v821, 0.5
    %v823 = vadd.f32 %v822, 0.5
    %v824 = vtanh.pop %v819
    %v826 = vrot.slane %v717, 4
    %v828 = vmul.f32 %v823, %v826
    %830 = vrot.lane.b32.xlu0 %v824, 32
    %v831 = vpop.permute.xlu0 %830
    %v833 = vmul.f32 %v823, %v831
    %835 = vrot.lane.b32.xlu0 %v833, 32
    %v836 = vpop.permute.xlu0 %835
    %v838 = vadd.f32 %v828, %v836
    %v839 = vtanh.pop %v838
    %841 = vrot.lane.b32.xlu0 %v839, 32
    %v842 = vpop.permute.xlu0 %841
    %v844 = vmul.f32 %v823, %v842
    %846 = vrot.lane.b32.xlu0 %v844, 64
    %v847 = vpop.permute.xlu0 %846
    %849 = vst.msk [vmem:[#allocation2 + $0x2] sm:$0x1] %vm607, %v847
    %850 = vrot.lane.b32.xlu0 %v844, 96
    %v851 = vpop.permute.xlu0 %850
    %853 = vst.msk [vmem:[#allocation2 + $0x3] sm:$0x4] %vm612, %v851
    %854 = vst.msk [vmem:[#allocation2 + $0x1] sm:$0x2] %vm614, %v844
    %855 = vrot.lane.b32.xlu0 %v844, 32
    %v856 = vpop.permute.xlu0 %855
    %858 = vst.msk [vmem:[#allocation2 + $0x2] sm:$0x8] %vm619, %v856
    %v859 = vsel %vm200, %v847, 0
    %861 = vmatprep.subr.mxu0 %v495
    %862 = vmatpush1.msra.mxu0 %v494
    %863 = vmatprep.subr.mxu0 %v497
    %864 = vmatpush1.msra.mxu0 %v496
    %865 = vmatprep.subr.mxu0 %v499
    %866 = vmatpush1.msra.mxu0 %v498
    %867 = vmatprep.subr.mxu0 %v501
    %868 = vmatpush1.msra.mxu0 %v500
    %869 = vmatprep.subr.mxu0 0.0
    %870 = vmatpush1.msra.mxu0 0.0
    %871 = vmatprep.subr.mxu0 0.0
    %872 = vmatpush1.msra.mxu0 0.0
    %873 = vmatprep.subr.mxu0 0.0
    %874 = vmatpush1.msra.mxu0 0.0
    %875 = vmatprep.subr.mxu0 0.0
    %876 = vmatpush1.msra.mxu0 0.0
    %877 = vmatprep.subr.mxu0 0.0
    %878 = vmatpush1.msra.mxu0 0.0
    %879 = vmatprep.subr.mxu0 0.0
    %880 = vmatpush1.msra.mxu0 0.0
    %881 = vmatprep.subr.mxu0 0.0
    %882 = vmatpush1.msra.mxu0 0.0
    %883 = vmatprep.subr.mxu0 0.0
    %884 = vmatpush1.msra.mxu0 0.0
    %885 = vmatprep.subr.mxu0 0.0
    %886 = vmatpush1.msra.mxu0 0.0
    %887 = vmatprep.subr.mxu0 0.0
    %888 = vmatpush1.msra.mxu0 0.0
    %889 = vmatprep.subr.mxu0 0.0
    %890 = vmatpush1.msra.mxu0 0.0
    %891 = vmatprep.subr.mxu0 0.0
    %892 = vmatpush1.msra.mxu0 0.0
    %893 = vmatprep.subr.mxu0 0.0
    %894 = vmatpush1.msra.mxu0 0.0
    %895 = vmatprep.subr.mxu0 0.0
    %896 = vmatpush1.msra.mxu0 0.0
    %897 = vmatprep.subr.mxu0 0.0
    %898 = vmatpush1.msra.mxu0 0.0
    %899 = vmatprep.subr.mxu0 0.0
    %900 = vmatpush1.msra.mxu0 0.0
    %901 = vmatprep.subr.mxu0 0.0
    %902 = vmatpush1.msra.mxu0 0.0
    %903 = vmatprep.subr.mxu0 0.0
    %904 = vmatpush1.msra.mxu0 0.0
    %905 = vmatprep.subr.mxu0 0.0
    %906 = vmatpush1.msra.mxu0 0.0
    %907 = vmatprep.subr.mxu0 0.0
    %908 = vmatpush1.msra.mxu0 0.0
    %909 = vmatprep.subr.mxu0 0.0
    %910 = vmatpush1.msra.mxu0 0.0
    %911 = vmatprep.subr.mxu0 0.0
    %912 = vmatpush1.msra.mxu0 0.0
    %913 = vmatprep.subr.mxu0 0.0
    %914 = vmatpush1.msra.mxu0 0.0
    %915 = vmatprep.subr.mxu0 0.0
    %916 = vmatpush1.msra.mxu0 0.0
    %917 = vmatprep.subr.mxu0 0.0
    %918 = vmatpush1.msra.mxu0 0.0
    %919 = vmatprep.subr.mxu0 0.0
    %920 = vmatpush1.msra.mxu0 0.0
    %921 = vmatprep.subr.mxu0 0.0
    %922 = vmatpush1.msra.mxu0 0.0
    %923 = vmatprep.subr.mxu0 0.0
    %924 = vmatpush1.msra.mxu0 0.0
    %925 = vmatprep.mubr.f32.mxu0 0.0
    %926 = vmatmul.mubr.f32.gmra.mrb[0].mxu0 %v859
    %v927 = vpop.f32.mrb[0].mxu0
    %v928 = vadd.f32 0.0, %v927
    %v929 = vpop.f32.mrb[0].mxu0
    %v930 = vadd.f32 0.0, %v929
    %931 = vdwg.mxu0
    %v932 = vsel %vm578, %v930, %v928
    %v934 = vrot.slane %v932, 4
    %v936 = vadd.f32 %v491, %v934
    %v937 = vmul.f32 %v936, 0.5
    %v938 = vtanh.pop %v937
    %v939 = vmul.f32 %v938, 0.5
    %v940 = vadd.f32 %v939, 0.5
    %v941 = vtanh.pop %v936
    %v943 = vrot.slane %v838, 4
    %v945 = vmul.f32 %v940, %v943
    %947 = vrot.lane.b32.xlu0 %v941, 32
    %v948 = vpop.permute.xlu0 %947
    %v950 = vmul.f32 %v940, %v948
    %952 = vrot.lane.b32.xlu0 %v950, 32
    %v953 = vpop.permute.xlu0 %952
    %v955 = vadd.f32 %v945, %v953
    %v956 = vtanh.pop %v955
    %958 = vrot.lane.b32.xlu0 %v956, 32
    %v959 = vpop.permute.xlu0 %958
    %v961 = vmul.f32 %v940, %v959
    %963 = vrot.lane.b32.xlu0 %v961, 64
    %v964 = vpop.permute.xlu0 %963
    %966 = vst.msk [vmem:[#allocation2 - $0x1] sm:$0x10] %vm728, %v964
    %967 = vrot.lane.b32.xlu0 %v961, 96
    %v968 = vpop.permute.xlu0 %967
    %970 = vst.msk [vmem:[#allocation2 - $0x2] sm:$0x40] %vm733, %v968
    %971 = vst.msk [vmem:[#allocation2 - $0x2] sm:$0x20] %vm735, %v961
    %972 = vrot.lane.b32.xlu0 %v961, 32
    %v973 = vpop.permute.xlu0 %972
    %975 = vst.msk [vmem:[#allocation2 - $0x3] sm:$0x80] %vm740, %v973
    %v976 = vrot.slane %v961, 4
    %977 = vrot.lane.b32.xlu0 %v976, 64
    %v978 = vpop.permute.xlu0 %977
    %v979 = vsel %vm200, %v978, 0
    %981 = vmatprep.subr.mxu0 %v495
    %982 = vmatpush1.msra.mxu0 %v494
    %983 = vmatprep.subr.mxu0 %v497
    %984 = vmatpush1.msra.mxu0 %v496
    %985 = vmatprep.subr.mxu0 %v499
    %986 = vmatpush1.msra.mxu0 %v498
    %987 = vmatprep.subr.mxu0 %v501
    %988 = vmatpush1.msra.mxu0 %v500
    %989 = vmatprep.subr.mxu0 0.0
    %990 = vmatpush1.msra.mxu0 0.0
    %991 = vmatprep.subr.mxu0 0.0
    %992 = vmatpush1.msra.mxu0 0.0
    %993 = vmatprep.subr.mxu0 0.0
    %994 = vmatpush1.msra.mxu0 0.0
    %995 = vmatprep.subr.mxu0 0.0
    %996 = vmatpush1.msra.mxu0 0.0
    %997 = vmatprep.subr.mxu0 0.0
    %998 = vmatpush1.msra.mxu0 0.0
    %999 = vmatprep.subr.mxu0 0.0
    %1000 = vmatpush1.msra.mxu0 0.0
    %1001 = vmatprep.subr.mxu0 0.0
    %1002 = vmatpush1.msra.mxu0 0.0
    %1003 = vmatprep.subr.mxu0 0.0
    %1004 = vmatpush1.msra.mxu0 0.0
    %1005 = vmatprep.subr.mxu0 0.0
    %1006 = vmatpush1.msra.mxu0 0.0
    %1007 = vmatprep.subr.mxu0 0.0
    %1008 = vmatpush1.msra.mxu0 0.0
    %1009 = vmatprep.subr.mxu0 0.0
    %1010 = vmatpush1.msra.mxu0 0.0
    %1011 = vmatprep.subr.mxu0 0.0
    %1012 = vmatpush1.msra.mxu0 0.0
    %1013 = vmatprep.subr.mxu0 0.0
    %1014 = vmatpush1.msra.mxu0 0.0
    %1015 = vmatprep.subr.mxu0 0.0
    %1016 = vmatpush1.msra.mxu0 0.0
    %1017 = vmatprep.subr.mxu0 0.0
    %1018 = vmatpush1.msra.mxu0 0.0
    %1019 = vmatprep.subr.mxu0 0.0
    %1020 = vmatpush1.msra.mxu0 0.0
    %1021 = vmatprep.subr.mxu0 0.0
    %1022 = vmatpush1.msra.mxu0 0.0
    %1023 = vmatprep.subr.mxu0 0.0
    %1024 = vmatpush1.msra.mxu0 0.0
    %1025 = vmatprep.subr.mxu0 0.0
    %1026 = vmatpush1.msra.mxu0 0.0
    %1027 = vmatprep.subr.mxu0 0.0
    %1028 = vmatpush1.msra.mxu0 0.0
    %1029 = vmatprep.subr.mxu0 0.0
    %1030 = vmatpush1.msra.mxu0 0.0
    %1031 = vmatprep.subr.mxu0 0.0
    %1032 = vmatpush1.msra.mxu0 0.0
    %1033 = vmatprep.subr.mxu0 0.0
    %1034 = vmatpush1.msra.mxu0 0.0
    %1035 = vmatprep.subr.mxu0 0.0
    %1036 = vmatpush1.msra.mxu0 0.0
    %1037 = vmatprep.subr.mxu0 0.0
    %1038 = vmatpush1.msra.mxu0 0.0
    %1039 = vmatprep.subr.mxu0 0.0
    %1040 = vmatpush1.msra.mxu0 0.0
    %1041 = vmatprep.subr.mxu0 0.0
    %1042 = vmatpush1.msra.mxu0 0.0
    %1043 = vmatprep.subr.mxu0 0.0
    %1044 = vmatpush1.msra.mxu0 0.0
    %1045 = vmatprep.mubr.f32.mxu0 0.0
    %1046 = vmatmul.mubr.f32.gmra.mrb[0].mxu0 %v979
    %v1047 = vpop.f32.mrb[0].mxu0
    %v1048 = vadd.f32 0.0, %v1047
    %v1049 = vpop.f32.mrb[0].mxu0
    %v1050 = vadd.f32 0.0, %v1049
    %1051 = vdwg.mxu0
    %v1052 = vsel %vm578, %v1050, %v1048
    %v1053 = vadd.f32 %v492, %v1052
    %v1054 = vmul.f32 %v1053, 0.5
    %v1055 = vtanh.pop %v1054
    %v1056 = vmul.f32 %v1055, 0.5
    %v1057 = vadd.f32 %v1056, 0.5
    %v1058 = vtanh.pop %v1053
    %v1060 = vrot.slane %v955, 4
    %v1062 = vmul.f32 %v1057, %v1060
    %1064 = vrot.lane.b32.xlu0 %v1058, 32
    %v1065 = vpop.permute.xlu0 %1064
    %v1067 = vmul.f32 %v1057, %v1065
    %1069 = vrot.lane.b32.xlu0 %v1067, 32
    %v1070 = vpop.permute.xlu0 %1069
    %v1072 = vadd.f32 %v1062, %v1070
    %v1073 = vtanh.pop %v1072
    %1075 = vrot.lane.b32.xlu0 %v1073, 32
    %v1076 = vpop.permute.xlu0 %1075
    %v1078 = vmul.f32 %v1057, %v1076
    %1080 = vrot.lane.b32.xlu0 %v1078, 64
    %v1081 = vpop.permute.xlu0 %1080
    %1083 = vst.msk [vmem:[#allocation2 + $0x4] sm:$0x1] %vm607, %v1081
    %1084 = vrot.lane.b32.xlu0 %v1078, 96
    %v1085 = vpop.permute.xlu0 %1084
    %1087 = vst.msk [vmem:[#allocation2 + $0x1] sm:$0x4] %vm612, %v1085
    %1088 = vst.msk [vmem:[#allocation2 + $0x3] sm:$0x2] %vm614, %v1078
    %1089 = vrot.lane.b32.xlu0 %v1078, 32
    %v1090 = vpop.permute.xlu0 %1089
    %1092 = vst.msk [vmem:[#allocation2] sm:$0x8] %vm619, %v1090
    %v1093 = vsel %vm200, %v1081, 0
    %1095 = vmatprep.subr.mxu0 %v495
    %1096 = vmatpush1.msra.mxu0 %v494
    %1097 = vmatprep.subr.mxu0 %v497
    %1098 = vmatpush1.msra.mxu0 %v496
    %1099 = vmatprep.subr.mxu0 %v499
    %1100 = vmatpush1.msra.mxu0 %v498
    %1101 = vmatprep.subr.mxu0 %v501
    %1102 = vmatpush1.msra.mxu0 %v500
    %1103 = vmatprep.subr.mxu0 0.0
    %1104 = vmatpush1.msra.mxu0 0.0
    %1105 = vmatprep.subr.mxu0 0.0
    %1106 = vmatpush1.msra.mxu0 0.0
    %1107 = vmatprep.subr.mxu0 0.0
    %1108 = vmatpush1.msra.mxu0 0.0
    %1109 = vmatprep.subr.mxu0 0.0
    %1110 = vmatpush1.msra.mxu0 0.0
    %1111 = vmatprep.subr.mxu0 0.0
    %1112 = vmatpush1.msra.mxu0 0.0
    %1113 = vmatprep.subr.mxu0 0.0
    %1114 = vmatpush1.msra.mxu0 0.0
    %1115 = vmatprep.subr.mxu0 0.0
    %1116 = vmatpush1.msra.mxu0 0.0
    %1117 = vmatprep.subr.mxu0 0.0
    %1118 = vmatpush1.msra.mxu0 0.0
    %1119 = vmatprep.subr.mxu0 0.0
    %1120 = vmatpush1.msra.mxu0 0.0
    %1121 = vmatprep.subr.mxu0 0.0
    %1122 = vmatpush1.msra.mxu0 0.0
    %1123 = vmatprep.subr.mxu0 0.0
    %1124 = vmatpush1.msra.mxu0 0.0
    %1125 = vmatprep.subr.mxu0 0.0
    %1126 = vmatpush1.msra.mxu0 0.0
    %1127 = vmatprep.subr.mxu0 0.0
    %1128 = vmatpush1.msra.mxu0 0.0
    %1129 = vmatprep.subr.mxu0 0.0
    %1130 = vmatpush1.msra.mxu0 0.0
    %1131 = vmatprep.subr.mxu0 0.0
    %1132 = vmatpush1.msra.mxu0 0.0
    %1133 = vmatprep.subr.mxu0 0.0
    %1134 = vmatpush1.msra.mxu0 0.0
    %1135 = vmatprep.subr.mxu0 0.0
    %1136 = vmatpush1.msra.mxu0 0.0
    %1137 = vmatprep.subr.mxu0 0.0
    %1138 = vmatpush1.msra.mxu0 0.0
    %1139 = vmatprep.subr.mxu0 0.0
    %1140 = vmatpush1.msra.mxu0 0.0
    %1141 = vmatprep.subr.mxu0 0.0
    %1142 = vmatpush1.msra.mxu0 0.0
    %1143 = vmatprep.subr.mxu0 0.0
    %1144 = vmatpush1.msra.mxu0 0.0
    %1145 = vmatprep.subr.mxu0 0.0
    %1146 = vmatpush1.msra.mxu0 0.0
    %1147 = vmatprep.subr.mxu0 0.0
    %1148 = vmatpush1.msra.mxu0 0.0
    %1149 = vmatprep.subr.mxu0 0.0
    %1150 = vmatpush1.msra.mxu0 0.0
    %1151 = vmatprep.subr.mxu0 0.0
    %1152 = vmatpush1.msra.mxu0 0.0
    %1153 = vmatprep.subr.mxu0 0.0
    %1154 = vmatpush1.msra.mxu0 0.0
    %1155 = vmatprep.subr.mxu0 0.0
    %1156 = vmatpush1.msra.mxu0 0.0
    %1157 = vmatprep.subr.mxu0 0.0
    %1158 = vmatpush1.msra.mxu0 0.0
    %1159 = vmatprep.mubr.f32.mxu0 0.0
    %1160 = vmatmul.mubr.f32.gmra.mrb[0].mxu0 %v1093
    %v1161 = vpop.f32.mrb[0].mxu0
    %v1162 = vadd.f32 0.0, %v1161
    %v1163 = vpop.f32.mrb[0].mxu0
    %v1164 = vadd.f32 0.0, %v1163
    %1165 = vdwg.mxu0
    %v1166 = vsel %vm578, %v1164, %v1162
    %v1168 = vrot.slane %v1166, 4
    %v1170 = vadd.f32 %v492, %v1168
    %v1171 = vmul.f32 %v1170, 0.5
    %v1172 = vtanh.pop %v1171
    %v1173 = vmul.f32 %v1172, 0.5
    %v1174 = vadd.f32 %v1173, 0.5
    %v1175 = vtanh.pop %v1170
    %v1177 = vrot.slane %v1072, 4
    %v1179 = vmul.f32 %v1174, %v1177
    %1181 = vrot.lane.b32.xlu0 %v1175, 32
    %v1182 = vpop.permute.xlu0 %1181
    %v1184 = vmul.f32 %v1174, %v1182
    %1186 = vrot.lane.b32.xlu0 %v1184, 32
    %v1187 = vpop.permute.xlu0 %1186
    %v1189 = vadd.f32 %v1179, %v1187
    %v1190 = vtanh.pop %v1189
    %1192 = vrot.lane.b32.xlu0 %v1190, 32
    %v1193 = vpop.permute.xlu0 %1192
    %v1195 = vmul.f32 %v1174, %v1193
    %1197 = vrot.lane.b32.xlu0 %v1195, 64
    %v1198 = vpop.permute.xlu0 %1197
    %1200 = vst.msk [vmem:[#allocation2 + $0x1] sm:$0x10] %vm728, %v1198
    %1201 = vrot.lane.b32.xlu0 %v1195, 96
    %v1202 = vpop.permute.xlu0 %1201
    %1204 = vst.msk [vmem:[#allocation2 - $0x4] sm:$0x40] %vm733, %v1202
    %1205 = vst.msk [vmem:[#allocation2] sm:$0x20] %vm735, %v1195
    %1206 = vrot.lane.b32.xlu0 %v1195, 32
    %v1207 = vpop.permute.xlu0 %1206
    %1209 = vst.msk [vmem:[#allocation2 - $0x5] sm:$0x80] %vm740, %v1207
    %v1210 = vrot.slane %v1195, 4
    %1211 = vrot.lane.b32.xlu0 %v1210, 64
    %v1212 = vpop.permute.xlu0 %1211
    %v1213 = vsel %vm200, %v1212, 0
    %1215 = vmatprep.subr.mxu0 %v495
    %1216 = vmatpush1.msra.mxu0 %v494
    %1217 = vmatprep.subr.mxu0 %v497
    %1218 = vmatpush1.msra.mxu0 %v496
    %1219 = vmatprep.subr.mxu0 %v499
    %1220 = vmatpush1.msra.mxu0 %v498
    %1221 = vmatprep.subr.mxu0 %v501
    %1222 = vmatpush1.msra.mxu0 %v500
    %1223 = vmatprep.subr.mxu0 0.0
    %1224 = vmatpush1.msra.mxu0 0.0
    %1225 = vmatprep.subr.mxu0 0.0
    %1226 = vmatpush1.msra.mxu0 0.0
    %1227 = vmatprep.subr.mxu0 0.0
    %1228 = vmatpush1.msra.mxu0 0.0
    %1229 = vmatprep.subr.mxu0 0.0
    %1230 = vmatpush1.msra.mxu0 0.0
    %1231 = vmatprep.subr.mxu0 0.0
    %1232 = vmatpush1.msra.mxu0 0.0
    %1233 = vmatprep.subr.mxu0 0.0
    %1234 = vmatpush1.msra.mxu0 0.0
    %1235 = vmatprep.subr.mxu0 0.0
    %1236 = vmatpush1.msra.mxu0 0.0
    %1237 = vmatprep.subr.mxu0 0.0
    %1238 = vmatpush1.msra.mxu0 0.0
    %1239 = vmatprep.subr.mxu0 0.0
    %1240 = vmatpush1.msra.mxu0 0.0
    %1241 = vmatprep.subr.mxu0 0.0
    %1242 = vmatpush1.msra.mxu0 0.0
    %1243 = vmatprep.subr.mxu0 0.0
    %1244 = vmatpush1.msra.mxu0 0.0
    %1245 = vmatprep.subr.mxu0 0.0
    %1246 = vmatpush1.msra.mxu0 0.0
    %1247 = vmatprep.subr.mxu0 0.0
    %1248 = vmatpush1.msra.mxu0 0.0
    %1249 = vmatprep.subr.mxu0 0.0
    %1250 = vmatpush1.msra.mxu0 0.0
    %1251 = vmatprep.subr.mxu0 0.0
    %1252 = vmatpush1.msra.mxu0 0.0
    %1253 = vmatprep.subr.mxu0 0.0
    %1254 = vmatpush1.msra.mxu0 0.0
    %1255 = vmatprep.subr.mxu0 0.0
    %1256 = vmatpush1.msra.mxu0 0.0
    %1257 = vmatprep.subr.mxu0 0.0
    %1258 = vmatpush1.msra.mxu0 0.0
    %1259 = vmatprep.subr.mxu0 0.0
    %1260 = vmatpush1.msra.mxu0 0.0
    %1261 = vmatprep.subr.mxu0 0.0
    %1262 = vmatpush1.msra.mxu0 0.0
    %1263 = vmatprep.subr.mxu0 0.0
    %1264 = vmatpush1.msra.mxu0 0.0
    %1265 = vmatprep.subr.mxu0 0.0
    %1266 = vmatpush1.msra.mxu0 0.0
    %1267 = vmatprep.subr.mxu0 0.0
    %1268 = vmatpush1.msra.mxu0 0.0
    %1269 = vmatprep.subr.mxu0 0.0
    %1270 = vmatpush1.msra.mxu0 0.0
    %1271 = vmatprep.subr.mxu0 0.0
    %1272 = vmatpush1.msra.mxu0 0.0
    %1273 = vmatprep.subr.mxu0 0.0
    %1274 = vmatpush1.msra.mxu0 0.0
    %1275 = vmatprep.subr.mxu0 0.0
    %1276 = vmatpush1.msra.mxu0 0.0
    %1277 = vmatprep.subr.mxu0 0.0
    %1278 = vmatpush1.msra.mxu0 0.0
    %1279 = vmatprep.mubr.f32.mxu0 0.0
    %1280 = vmatmul.mubr.f32.gmra.mrb[0].mxu0 %v1213
    %v1281 = vpop.f32.mrb[0].mxu0
    %v1282 = vadd.f32 0.0, %v1281
    %v1283 = vpop.f32.mrb[0].mxu0
    %v1284 = vadd.f32 0.0, %v1283
    %1285 = vdwg.mxu0
    %v1286 = vsel %vm578, %v1284, %v1282
    %v1287 = vadd.f32 %v493, %v1286
    %v1288 = vmul.f32 %v1287, 0.5
    %v1289 = vtanh.pop %v1288
    %v1290 = vmul.f32 %v1289, 0.5
    %v1291 = vadd.f32 %v1290, 0.5
    %v1292 = vtanh.pop %v1287
    %v1294 = vrot.slane %v1189, 4
    %v1296 = vmul.f32 %v1291, %v1294
    %1298 = vrot.lane.b32.xlu0 %v1292, 32
    %v1299 = vpop.permute.xlu0 %1298
    %v1301 = vmul.f32 %v1291, %v1299
    %1303 = vrot.lane.b32.xlu0 %v1301, 32
    %v1304 = vpop.permute.xlu0 %1303
    %v1306 = vadd.f32 %v1296, %v1304
    %v1307 = vtanh.pop %v1306
    %1309 = vrot.lane.b32.xlu0 %v1307, 32
    %v1310 = vpop.permute.xlu0 %1309
    %v1312 = vmul.f32 %v1291, %v1310
    %1314 = vrot.lane.b32.xlu0 %v1312, 64
    %v1315 = vpop.permute.xlu0 %1314
    %1317 = vst.msk [vmem:[#allocation2 + $0x6] sm:$0x1] %vm607, %v1315
    %1318 = vrot.lane.b32.xlu0 %v1312, 96
    %v1319 = vpop.permute.xlu0 %1318
    %1321 = vst.msk [vmem:[#allocation2 - $0x1] sm:$0x4] %vm612, %v1319
    %1322 = vst.msk [vmem:[#allocation2 + $0x5] sm:$0x2] %vm614, %v1312
    %1323 = vrot.lane.b32.xlu0 %v1312, 32
    %v1324 = vpop.permute.xlu0 %1323
    %1326 = vst.msk [vmem:[#allocation2 - $0x2] sm:$0x8] %vm619, %v1324
    %v1327 = vsel %vm200, %v1315, 0
    %1329 = vmatprep.subr.mxu0 %v495
    %1330 = vmatpush1.msra.mxu0 %v494
    %1331 = vmatprep.subr.mxu0 %v497
    %1332 = vmatpush1.msra.mxu0 %v496
    %1333 = vmatprep.subr.mxu0 %v499
    %1334 = vmatpush1.msra.mxu0 %v498
    %1335 = vmatprep.subr.mxu0 %v501
    %1336 = vmatpush1.msra.mxu0 %v500
    %1337 = vmatprep.subr.mxu0 0.0
    %1338 = vmatpush1.msra.mxu0 0.0
    %1339 = vmatprep.subr.mxu0 0.0
    %1340 = vmatpush1.msra.mxu0 0.0
    %1341 = vmatprep.subr.mxu0 0.0
    %1342 = vmatpush1.msra.mxu0 0.0
    %1343 = vmatprep.subr.mxu0 0.0
    %1344 = vmatpush1.msra.mxu0 0.0
    %1345 = vmatprep.subr.mxu0 0.0
    %1346 = vmatpush1.msra.mxu0 0.0
    %1347 = vmatprep.subr.mxu0 0.0
    %1348 = vmatpush1.msra.mxu0 0.0
    %1349 = vmatprep.subr.mxu0 0.0
    %1350 = vmatpush1.msra.mxu0 0.0
    %1351 = vmatprep.subr.mxu0 0.0
    %1352 = vmatpush1.msra.mxu0 0.0
    %1353 = vmatprep.subr.mxu0 0.0
    %1354 = vmatpush1.msra.mxu0 0.0
    %1355 = vmatprep.subr.mxu0 0.0
    %1356 = vmatpush1.msra.mxu0 0.0
    %1357 = vmatprep.subr.mxu0 0.0
    %1358 = vmatpush1.msra.mxu0 0.0
    %1359 = vmatprep.subr.mxu0 0.0
    %1360 = vmatpush1.msra.mxu0 0.0
    %1361 = vmatprep.subr.mxu0 0.0
    %1362 = vmatpush1.msra.mxu0 0.0
    %1363 = vmatprep.subr.mxu0 0.0
    %1364 = vmatpush1.msra.mxu0 0.0
    %1365 = vmatprep.subr.mxu0 0.0
    %1366 = vmatpush1.msra.mxu0 0.0
    %1367 = vmatprep.subr.mxu0 0.0
    %1368 = vmatpush1.msra.mxu0 0.0
    %1369 = vmatprep.subr.mxu0 0.0
    %1370 = vmatpush1.msra.mxu0 0.0
    %1371 = vmatprep.subr.mxu0 0.0
    %1372 = vmatpush1.msra.mxu0 0.0
    %1373 = vmatprep.subr.mxu0 0.0
    %1374 = vmatpush1.msra.mxu0 0.0
    %1375 = vmatprep.subr.mxu0 0.0
    %1376 = vmatpush1.msra.mxu0 0.0
    %1377 = vmatprep.subr.mxu0 0.0
    %1378 = vmatpush1.msra.mxu0 0.0
    %1379 = vmatprep.subr.mxu0 0.0
    %1380 = vmatpush1.msra.mxu0 0.0
    %1381 = vmatprep.subr.mxu0 0.0
    %1382 = vmatpush1.msra.mxu0 0.0
    %1383 = vmatprep.subr.mxu0 0.0
    %1384 = vmatpush1.msra.mxu0 0.0
    %1385 = vmatprep.subr.mxu0 0.0
    %1386 = vmatpush1.msra.mxu0 0.0
    %1387 = vmatprep.subr.mxu0 0.0
    %1388 = vmatpush1.msra.mxu0 0.0
    %1389 = vmatprep.subr.mxu0 0.0
    %1390 = vmatpush1.msra.mxu0 0.0
    %1391 = vmatprep.subr.mxu0 0.0
    %1392 = vmatpush1.msra.mxu0 0.0
    %1393 = vmatprep.mubr.f32.mxu0 0.0
    %1394 = vmatmul.mubr.f32.gmra.mrb[0].mxu0 %v1327
    %v1395 = vpop.f32.mrb[0].mxu0
    %v1396 = vadd.f32 0.0, %v1395
    %v1397 = vpop.f32.mrb[0].mxu0
    %v1398 = vadd.f32 0.0, %v1397
    %1399 = vdwg.mxu0
    %v1400 = vsel %vm578, %v1398, %v1396
    %v1402 = vrot.slane %v1400, 4
    %v1404 = vadd.f32 %v493, %v1402
    %v1405 = vmul.f32 %v1404, 0.5
    %v1406 = vtanh.pop %v1405
    %v1407 = vmul.f32 %v1406, 0.5
    %v1408 = vadd.f32 %v1407, 0.5
    %v1409 = vtanh.pop %v1404
    %v1411 = vrot.slane %v1306, 4
    %v1413 = vmul.f32 %v1408, %v1411
    %1415 = vrot.lane.b32.xlu0 %v1409, 32
    %v1416 = vpop.permute.xlu0 %1415
    %v1418 = vmul.f32 %v1408, %v1416
    %1420 = vrot.lane.b32.xlu0 %v1418, 32
    %v1421 = vpop.permute.xlu0 %1420
    %v1423 = vadd.f32 %v1413, %v1421
    %v1424 = vtanh.pop %v1423
    %1426 = vrot.lane.b32.xlu0 %v1424, 32
    %v1427 = vpop.permute.xlu0 %1426
    %v1429 = vmul.f32 %v1408, %v1427
    %1431 = vrot.lane.b32.xlu0 %v1429, 64
    %v1432 = vpop.permute.xlu0 %1431
    %1434 = vst.msk [vmem:[#allocation2 + $0x3] sm:$0x10] %vm728, %v1432
    %1435 = vrot.lane.b32.xlu0 %v1429, 96
    %v1436 = vpop.permute.xlu0 %1435
    %1438 = vst.msk [vmem:[#allocation2 - $0x6] sm:$0x40] %vm733, %v1436
    %1439 = vst.msk [vmem:[#allocation2 + $0x2] sm:$0x20] %vm735, %v1429
    %1440 = vrot.lane.b32.xlu0 %v1429, 32
    %v1441 = vpop.permute.xlu0 %1440
    %1443 = vst.msk [vmem:[#allocation2 - $0x7] sm:$0x80] %vm740, %v1441
    %v1444 = vld [vmem:[#allocation2] sm:$0xff]
    %v1445 = vld [vmem:[%s7] sm:$0xff]
    %v1446 = vld [vmem:[%s7 + $0x8] sm:$0xff]
    %v1447 = vld [vmem:[%s7 + $0x10] sm:$0xff]
    %v1448 = vld [vmem:[%s7 + $0x18] sm:$0xff]
    %v1449 = vld [vmem:[%s7 + $0x20] sm:$0xff]
    %v1450 = vld [vmem:[%s7 + $0x28] sm:$0xff]
    %v1451 = vld [vmem:[%s7 + $0x30] sm:$0xff]
    %v1452 = vld [vmem:[%s7 + $0x38] sm:$0xff]
    %v1453 = vld [vmem:[%s7 + $0x40] sm:$0xff]
    %v1454 = vld [vmem:[%s7 + $0x48] sm:$0xff]
    %v1455 = vld [vmem:[%s7 + $0x50] sm:$0xff]
    %v1456 = vld [vmem:[%s7 + $0x58] sm:$0xff]
    %v1457 = vld [vmem:[%s7 + $0x60] sm:$0xff]
    %v1458 = vld [vmem:[%s7 + $0x68] sm:$0xff]
    %v1459 = vld [vmem:[%s7 + $0x70] sm:$0xff]
    %v1460 = vld [vmem:[%s7 + $0x78] sm:$0xff]
    %v1461 = vld [vmem:[%s8] sm:$0x1]
    %v1463 = vlaneseq
    %v1464 = vshrl.u32 %v1463, 7
    %v1465 = vsub.s32 0, %v1464
    %v1466 = vrot.slane %v1461, %v1465
    %1468 = vmatprep.subr.mxu0 0.0
    %1469 = vmatpush1.msra.mxu0 %v1445
    %1470 = vmatprep.subr.mxu0 0.0
    %1471 = vmatpush1.msra.mxu0 %v1446
    %1472 = vmatprep.subr.mxu0 0.0
    %1473 = vmatpush1.msra.mxu0 %v1447
    %1474 = vmatprep.subr.mxu0 0.0
    %1475 = vmatpush1.msra.mxu0 %v1448
    %1476 = vmatprep.subr.mxu0 0.0
    %1477 = vmatpush1.msra.mxu0 %v1449
    %1478 = vmatprep.subr.mxu0 0.0
    %1479 = vmatpush1.msra.mxu0 %v1450
    %1480 = vmatprep.subr.mxu0 0.0
    %1481 = vmatpush1.msra.mxu0 %v1451
    %1482 = vmatprep.subr.mxu0 0.0
    %1483 = vmatpush1.msra.mxu0 %v1452
    %1484 = vmatprep.subr.mxu0 0.0
    %1485 = vmatpush1.msra.mxu0 %v1453
    %1486 = vmatprep.subr.mxu0 0.0
    %1487 = vmatpush1.msra.mxu0 %v1454
    %1488 = vmatprep.subr.mxu0 0.0
    %1489 = vmatpush1.msra.mxu0 %v1455
    %1490 = vmatprep.subr.mxu0 0.0
    %1491 = vmatpush1.msra.mxu0 %v1456
    %1492 = vmatprep.subr.mxu0 0.0
    %1493 = vmatpush1.msra.mxu0 %v1457
    %1494 = vmatprep.subr.mxu0 0.0
    %1495 = vmatpush1.msra.mxu0 %v1458
    %1496 = vmatprep.subr.mxu0 0.0
    %1497 = vmatpush1.msra.mxu0 %v1459
    %1498 = vmatprep.subr.mxu0 0.0
    %1499 = vmatpush1.msra.mxu0 %v1460
    %1500 = vmatprep.subr.mxu0 0.0
    %1501 = vmatpush1.msra.mxu0 0.0
    %1502 = vmatprep.subr.mxu0 0.0
    %1503 = vmatpush1.msra.mxu0 0.0
    %1504 = vmatprep.subr.mxu0 0.0
    %1505 = vmatpush1.msra.mxu0 0.0
    %1506 = vmatprep.subr.mxu0 0.0
    %1507 = vmatpush1.msra.mxu0 0.0
    %1508 = vmatprep.subr.mxu0 0.0
    %1509 = vmatpush1.msra.mxu0 0.0
    %1510 = vmatprep.subr.mxu0 0.0
    %1511 = vmatpush1.msra.mxu0 0.0
    %1512 = vmatprep.subr.mxu0 0.0
    %1513 = vmatpush1.msra.mxu0 0.0
    %1514 = vmatprep.subr.mxu0 0.0
    %1515 = vmatpush1.msra.mxu0 0.0
    %1516 = vmatprep.subr.mxu0 0.0
    %1517 = vmatpush1.msra.mxu0 0.0
    %1518 = vmatprep.subr.mxu0 0.0
    %1519 = vmatpush1.msra.mxu0 0.0
    %1520 = vmatprep.subr.mxu0 0.0
    %1521 = vmatpush1.msra.mxu0 0.0
    %1522 = vmatprep.subr.mxu0 0.0
    %1523 = vmatpush1.msra.mxu0 0.0
    %1524 = vmatprep.subr.mxu0 0.0
    %1525 = vmatpush1.msra.mxu0 0.0
    %1526 = vmatprep.subr.mxu0 0.0
    %1527 = vmatpush1.msra.mxu0 0.0
    %1528 = vmatprep.subr.mxu0 0.0
    %1529 = vmatpush1.msra.mxu0 0.0
    %1530 = vmatprep.subr.mxu0 0.0
    %1531 = vmatpush1.msra.mxu0 0.0
    %1532 = vmatprep.mubr.f32.mxu0 0.0
    %1533 = vmatmul.mubr.f32.gmra.mrb[0].mxu0 %v1444
    %v1534 = vpop.f32.mrb[0].mxu0
    %v1535 = vadd.f32 %v1466, %v1534
    %v1536 = vpop.f32.mrb[0].mxu0
    %1537 = vdwg.mxu0
    %v1538 = vmax.f32 %v1535, 0.0
    %v1539 = vld [vmem:[%s9] sm:$0xff]
    %v1540 = vld [vmem:[%s9 + $0x8] sm:$0xff]
    %v1541 = vld [vmem:[%s9 + $0x10] sm:$0xff]
    %v1542 = vld [vmem:[%s9 + $0x18] sm:$0xff]
    %v1543 = vld [vmem:[%s9 + $0x20] sm:$0xff]
    %v1544 = vld [vmem:[%s9 + $0x28] sm:$0xff]
    %v1545 = vld [vmem:[%s9 + $0x30] sm:$0xff]
    %v1546 = vld [vmem:[%s9 + $0x38] sm:$0xff]
    %v1547 = vld [vmem:[%s10] sm:$0x1]
    %v1549 = vlaneseq
    %v1550 = vshrl.u32 %v1549, 7
    %v1551 = vsub.s32 0, %v1550
    %v1552 = vrot.slane %v1547, %v1551
    %vm1554 = vcmask 523264
    %v1556 = vsel %vm1554, %v1538, 0
    %1558 = vmatprep.subr.mxu0 0.0
    %1559 = vmatpush1.msra.mxu0 %v1539
    %1560 = vmatprep.subr.mxu0 0.0
    %1561 = vmatpush1.msra.mxu0 %v1540
    %1562 = vmatprep.subr.mxu0 0.0
    %1563 = vmatpush1.msra.mxu0 %v1541
    %1564 = vmatprep.subr.mxu0 0.0
    %1565 = vmatpush1.msra.mxu0 %v1542
    %1566 = vmatprep.subr.mxu0 0.0
    %1567 = vmatpush1.msra.mxu0 %v1543
    %1568 = vmatprep.subr.mxu0 0.0
    %1569 = vmatpush1.msra.mxu0 %v1544
    %1570 = vmatprep.subr.mxu0 0.0
    %1571 = vmatpush1.msra.mxu0 %v1545
    %1572 = vmatprep.subr.mxu0 0.0
    %1573 = vmatpush1.msra.mxu0 %v1546
    %1574 = vmatprep.subr.mxu0 0.0
    %1575 = vmatpush1.msra.mxu0 0.0
    %1576 = vmatprep.subr.mxu0 0.0
    %1577 = vmatpush1.msra.mxu0 0.0
    %1578 = vmatprep.subr.mxu0 0.0
    %1579 = vmatpush1.msra.mxu0 0.0
    %1580 = vmatprep.subr.mxu0 0.0
    %1581 = vmatpush1.msra.mxu0 0.0
    %1582 = vmatprep.subr.mxu0 0.0
    %1583 = vmatpush1.msra.mxu0 0.0
    %1584 = vmatprep.subr.mxu0 0.0
    %1585 = vmatpush1.msra.mxu0 0.0
    %1586 = vmatprep.subr.mxu0 0.0
    %1587 = vmatpush1.msra.mxu0 0.0
    %1588 = vmatprep.subr.mxu0 0.0
    %1589 = vmatpush1.msra.mxu0 0.0
    %1590 = vmatprep.subr.mxu0 0.0
    %1591 = vmatpush1.msra.mxu0 0.0
    %1592 = vmatprep.subr.mxu0 0.0
    %1593 = vmatpush1.msra.mxu0 0.0
    %1594 = vmatprep.subr.mxu0 0.0
    %1595 = vmatpush1.msra.mxu0 0.0
    %1596 = vmatprep.subr.mxu0 0.0
    %1597 = vmatpush1.msra.mxu0 0.0
    %1598 = vmatprep.subr.mxu0 0.0
    %1599 = vmatpush1.msra.mxu0 0.0
    %1600 = vmatprep.subr.mxu0 0.0
    %1601 = vmatpush1.msra.mxu0 0.0
    %1602 = vmatprep.subr.mxu0 0.0
    %1603 = vmatpush1.msra.mxu0 0.0
    %1604 = vmatprep.subr.mxu0 0.0
    %1605 = vmatpush1.msra.mxu0 0.0
    %1606 = vmatprep.subr.mxu0 0.0
    %1607 = vmatpush1.msra.mxu0 0.0
    %1608 = vmatprep.subr.mxu0 0.0
    %1609 = vmatpush1.msra.mxu0 0.0
    %1610 = vmatprep.subr.mxu0 0.0
    %1611 = vmatpush1.msra.mxu0 0.0
    %1612 = vmatprep.subr.mxu0 0.0
    %1613 = vmatpush1.msra.mxu0 0.0
    %1614 = vmatprep.subr.mxu0 0.0
    %1615 = vmatpush1.msra.mxu0 0.0
    %1616 = vmatprep.subr.mxu0 0.0
    %1617 = vmatpush1.msra.mxu0 0.0
    %1618 = vmatprep.subr.mxu0 0.0
    %1619 = vmatpush1.msra.mxu0 0.0
    %1620 = vmatprep.subr.mxu0 0.0
    %1621 = vmatpush1.msra.mxu0 0.0
    %1622 = vmatprep.mubr.f32.mxu0 0.0
    %1623 = vmatmul.mubr.f32.gmra.mrb[0].mxu0 %v1556
    %v1624 = vpop.f32.mrb[0].mxu0
    %v1625 = vadd.f32 %v1552, %v1624
    %v1626 = vpop.f32.mrb[0].mxu0
    %1627 = vdwg.mxu0
    %v1628 = vmax.f32 %v1625, 0.0
    %v1629 = vld [vmem:[%s11] sm:$0xff]
    %v1630 = vld [vmem:[%s11 + $0x8] sm:$0xff]
    %v1631 = vld [vmem:[%s11 + $0x10] sm:$0xff]
    %v1632 = vld [vmem:[%s11 + $0x18] sm:$0xff]
    %v1634 = vsel %vm200, %v1628, 0
    %1636 = vmatprep.subr.mxu0 0.0
    %1637 = vmatpush1.msra.mxu0 %v1629
    %1638 = vmatprep.subr.mxu0 0.0
    %1639 = vmatpush1.msra.mxu0 %v1630
    %1640 = vmatprep.subr.mxu0 0.0
    %1641 = vmatpush1.msra.mxu0 %v1631
    %1642 = vmatprep.subr.mxu0 0.0
    %1643 = vmatpush1.msra.mxu0 %v1632
    %1644 = vmatprep.subr.mxu0 0.0
    %1645 = vmatpush1.msra.mxu0 0.0
    %1646 = vmatprep.subr.mxu0 0.0
    %1647 = vmatpush1.msra.mxu0 0.0
    %1648 = vmatprep.subr.mxu0 0.0
    %1649 = vmatpush1.msra.mxu0 0.0
    %1650 = vmatprep.subr.mxu0 0.0
    %1651 = vmatpush1.msra.mxu0 0.0
    %1652 = vmatprep.subr.mxu0 0.0
    %1653 = vmatpush1.msra.mxu0 0.0
    %1654 = vmatprep.subr.mxu0 0.0
    %1655 = vmatpush1.msra.mxu0 0.0
    %1656 = vmatprep.subr.mxu0 0.0
    %1657 = vmatpush1.msra.mxu0 0.0
    %1658 = vmatprep.subr.mxu0 0.0
    %1659 = vmatpush1.msra.mxu0 0.0
    %1660 = vmatprep.subr.mxu0 0.0
    %1661 = vmatpush1.msra.mxu0 0.0
    %1662 = vmatprep.subr.mxu0 0.0
    %1663 = vmatpush1.msra.mxu0 0.0
    %1664 = vmatprep.subr.mxu0 0.0
    %1665 = vmatpush1.msra.mxu0 0.0
    %1666 = vmatprep.subr.mxu0 0.0
    %1667 = vmatpush1.msra.mxu0 0.0
    %1668 = vmatprep.subr.mxu0 0.0
    %1669 = vmatpush1.msra.mxu0 0.0
    %1670 = vmatprep.subr.mxu0 0.0
    %1671 = vmatpush1.msra.mxu0 0.0
    %1672 = vmatprep.subr.mxu0 0.0
    %1673 = vmatpush1.msra.mxu0 0.0
    %1674 = vmatprep.subr.mxu0 0.0
    %1675 = vmatpush1.msra.mxu0 0.0
    %1676 = vmatprep.subr.mxu0 0.0
    %1677 = vmatpush1.msra.mxu0 0.0
    %1678 = vmatprep.subr.mxu0 0.0
    %1679 = vmatpush1.msra.mxu0 0.0
    %1680 = vmatprep.subr.mxu0 0.0
    %1681 = vmatpush1.msra.mxu0 0.0
    %1682 = vmatprep.subr.mxu0 0.0
    %1683 = vmatpush1.msra.mxu0 0.0
    %1684 = vmatprep.subr.mxu0 0.0
    %1685 = vmatpush1.msra.mxu0 0.0
    %1686 = vmatprep.subr.mxu0 0.0
    %1687 = vmatpush1.msra.mxu0 0.0
    %1688 = vmatprep.subr.mxu0 0.0
    %1689 = vmatpush1.msra.mxu0 0.0
    %1690 = vmatprep.subr.mxu0 0.0
    %1691 = vmatpush1.msra.mxu0 0.0
    %1692 = vmatprep.subr.mxu0 0.0
    %1693 = vmatpush1.msra.mxu0 0.0
    %1694 = vmatprep.subr.mxu0 0.0
    %1695 = vmatpush1.msra.mxu0 0.0
    %1696 = vmatprep.subr.mxu0 0.0
    %1697 = vmatpush1.msra.mxu0 0.0
    %1698 = vmatprep.subr.mxu0 0.0
    %1699 = vmatpush1.msra.mxu0 0.0
    %1700 = vmatprep.mubr.f32.mxu0 0.0
    %1701 = vmatmul.mubr.f32.gmra.mrb[0].mxu0 %v1634
    %v1702 = vpop.f32.mrb[0].mxu0
    %v1703 = vadd.f32 0.0, %v1702
    %v1704 = vpop.f32.mrb[0].mxu0
    %1705 = vdwg.mxu0
    %1706 = vrot.lane.b32.xlu0 %v1628, 112
    %v1707 = vpop.permute.xlu0 %1706
    %v1709 = vmul.f32 %v1703, %v1707
    %v1710 = vsel %vm82, %v1709, 0.0
    %1711 = vadd.xlane.f32.xlu0 %v1710
    %v1712 = vpop.xlane.xlu0 %1711
    %v1713 = vmul.f32 %v1703, %v1628
    %1715 = vrot.lane.b32.xlu0 %v1713, 112
    %v1716 = vpop.permute.xlu0 %1715
    %v1718 = vsel %vm82, %v1716, 0.0
    %1719 = vadd.xlane.f32.xlu0 %v1718
    %v1720 = vpop.xlane.xlu0 %1719
    %v1721 = vld [vmem:[#allocation6] sm:$0xff]
    %v1722 = vld [vmem:[#allocation6 + $0x8] sm:$0xff]
    %v1723 = vld [vmem:[#allocation6 + $0x10] sm:$0xff]
    %v1724 = vld [vmem:[#allocation6 + $0x18] sm:$0xff]
    %v1725 = vld [vmem:[%s13] sm:$0x1]
    %v1727 = vlaneseq
    %v1728 = vshrl.u32 %v1727, 7
    %v1729 = vsub.s32 0, %v1728
    %v1730 = vrot.slane %v1725, %v1729
    %1732 = vmatprep.subr.mxu0 0.0
    %1733 = vmatpush1.msra.mxu0 %v1721
    %1734 = vmatprep.subr.mxu0 0.0
    %1735 = vmatpush1.msra.mxu0 %v1722
    %1736 = vmatprep.subr.mxu0 0.0
    %1737 = vmatpush1.msra.mxu0 %v1723
    %1738 = vmatprep.subr.mxu0 0.0
    %1739 = vmatpush1.msra.mxu0 %v1724
    %1740 = vmatprep.subr.mxu0 0.0
    %1741 = vmatpush1.msra.mxu0 0.0
    %1742 = vmatprep.subr.mxu0 0.0
    %1743 = vmatpush1.msra.mxu0 0.0
    %1744 = vmatprep.subr.mxu0 0.0
    %1745 = vmatpush1.msra.mxu0 0.0
    %1746 = vmatprep.subr.mxu0 0.0
    %1747 = vmatpush1.msra.mxu0 0.0
    %1748 = vmatprep.subr.mxu0 0.0
    %1749 = vmatpush1.msra.mxu0 0.0
    %1750 = vmatprep.subr.mxu0 0.0
    %1751 = vmatpush1.msra.mxu0 0.0
    %1752 = vmatprep.subr.mxu0 0.0
    %1753 = vmatpush1.msra.mxu0 0.0
    %1754 = vmatprep.subr.mxu0 0.0
    %1755 = vmatpush1.msra.mxu0 0.0
    %1756 = vmatprep.subr.mxu0 0.0
    %1757 = vmatpush1.msra.mxu0 0.0
    %1758 = vmatprep.subr.mxu0 0.0
    %1759 = vmatpush1.msra.mxu0 0.0
    %1760 = vmatprep.subr.mxu0 0.0
    %1761 = vmatpush1.msra.mxu0 0.0
    %1762 = vmatprep.subr.mxu0 0.0
    %1763 = vmatpush1.msra.mxu0 0.0
    %1764 = vmatprep.subr.mxu0 0.0
    %1765 = vmatpush1.msra.mxu0 0.0
    %1766 = vmatprep.subr.mxu0 0.0
    %1767 = vmatpush1.msra.mxu0 0.0
    %1768 = vmatprep.subr.mxu0 0.0
    %1769 = vmatpush1.msra.mxu0 0.0
    %1770 = vmatprep.subr.mxu0 0.0
    %1771 = vmatpush1.msra.mxu0 0.0
    %1772 = vmatprep.subr.mxu0 0.0
    %1773 = vmatpush1.msra.mxu0 0.0
    %1774 = vmatprep.subr.mxu0 0.0
    %1775 = vmatpush1.msra.mxu0 0.0
    %1776 = vmatprep.subr.mxu0 0.0
    %1777 = vmatpush1.msra.mxu0 0.0
    %1778 = vmatprep.subr.mxu0 0.0
    %1779 = vmatpush1.msra.mxu0 0.0
    %1780 = vmatprep.subr.mxu0 0.0
    %1781 = vmatpush1.msra.mxu0 0.0
    %1782 = vmatprep.subr.mxu0 0.0
    %1783 = vmatpush1.msra.mxu0 0.0
    %1784 = vmatprep.subr.mxu0 0.0
    %1785 = vmatpush1.msra.mxu0 0.0
    %1786 = vmatprep.subr.mxu0 0.0
    %1787 = vmatpush1.msra.mxu0 0.0
    %1788 = vmatprep.subr.mxu0 0.0
    %1789 = vmatpush1.msra.mxu0 0.0
    %1790 = vmatprep.subr.mxu0 0.0
    %1791 = vmatpush1.msra.mxu0 0.0
    %1792 = vmatprep.subr.mxu0 0.0
    %1793 = vmatpush1.msra.mxu0 0.0
    %1794 = vmatprep.subr.mxu0 0.0
    %1795 = vmatpush1.msra.mxu0 0.0
    %1796 = vmatprep.mubr.f32.mxu0 0.0
    %1797 = vmatmul.mubr.f32.gmra.mrb[0].mxu0 %v1634
    %v1798 = vpop.f32.mrb[0].mxu0
    %v1799 = vadd.f32 %v1730, %v1798
    %v1800 = vpop.f32.mrb[0].mxu0
    %1801 = vdwg.mxu0
    %v1802 = vlaneseq
    %v1803 = vand.u32 %v1802, 127
    %vm1804 = vcmp.eq.s32.totalorder %v1803, 0
    %v1805 = vsel %vm1804, %v1712, 0.0
    %v1806 = vadd.f32 %v1799, %v1805
    %vm1807 = vcmp.eq.s32.totalorder %v1803, 1
    %v1808 = vsel %vm1807, %v1720, 0.0
    %v1809 = vadd.f32 %v1806, %v1808
    %1810 = vst [vmem:[#allocation8] sm:$0xff] %v1809
    // Predicated region
    $region66: #{tpu_custom_call.1} parent=1 // pred_check
      _
    $region67: #{tpu_custom_call.1} parent=1 // pred_check_branch
      %1812 = sbr.rel (0) target = $region69
    $region68: #{tpu_custom_call.1} parent=1 // pred_region
      %s1814 = ssub.s32 128, 128
      %1815 = vsyncadd [#allocation5], %s1814
      %s1817 = sshll.u32 [#allocation8], 4
      %s1818 = int_to_ptr.vmem [resolvable:$true] %s1817
      %1820 = dma.vmem_to_hbm [thread:$0]  %s1818, 128, %s14, [#allocation5]
    $region69: #{tpu_custom_call.1} parent=1 // pred_fallthru
      _
    // Predicated region
    $region70: #{tpu_custom_call.1} parent=1 // pred_check
      _
    $region71: #{tpu_custom_call.1} parent=1 // pred_check_branch
      %1822 = sbr.rel (0) target = $region73
    $region72: #{tpu_custom_call.1} parent=1 // pred_region
      %1823 = dma.done [#allocation5], 128
    $region73: #{tpu_custom_call.1} parent=1 // pred_fallthru
      _
    %1824 = vsyncpa [#allocation4], 1
    %1825 = vsyncpa [#allocation7], 1
    %1826 = vsyncpa [#allocation5], 1

</llo_original>
